<compile_context>
chip_gen: v7x
topology: tpu7x:2x2x1
jax: 0.10.0
libtpu: 0.0.40
codegen_flags: <defaults>
</compile_context>

<pallas_src>
import functools

import jax
import jax.numpy as jnp
from jax import lax
from jax.experimental import pallas as pl
from jax.experimental.pallas import tpu as pltpu


# ---------------------------------------------------------------------------
# shared in-kernel helper: flat-layout 7x7 conv + sigmoid
# ---------------------------------------------------------------------------
def _conv_sigmoid_flat(w_ref, m_ref, avg, mx, *, H, W, K):
    """sigmoid('same' KxK conv over the 2-channel [avg, max] map), flat layout.

    avg, mx : (bB, 1, H*W) f32 lane-dense spatial maps.
    w_ref   : (2*K*K,) f32 SMEM conv weight, PyTorch OIHW order flattened
              (w[0,0,ki,kj] -> w_ref[ki*K+kj], w[0,1,ki,kj] -> w_ref[K*K+ki*K+kj]).
    m_ref   : (2*K, H*W) f32 border masks; row kj < K is the column mask for
              tap kj, row K+ki is the row mask for tap ki.
    Returns : (bB, 1, H*W) f32.
    """
    pad = K // 2
    HW = H * W

    # Column-shifted, column-masked views; hoisted and reused across all K row
    # taps (2*K lane rolls instead of 2*K*K).  Rolls ride the XLU slot.
    def col_view(m, kj):
        o = kj - pad
        if o == 0:
            return m
        v = pltpu.roll(m, shift=(-o) % HW, axis=2)
        return v * m_ref[pl.ds(kj, 1), :]

    ca = [col_view(avg, kj) for kj in range(K)]
    cm = [col_view(mx, kj) for kj in range(K)]

    acc = None
    for ki in range(K):
        o = ki - pad
        inner = w_ref[ki * K] * ca[0] + w_ref[K * K + ki * K] * cm[0]
        for kj in range(1, K):
            inner = inner + w_ref[ki * K + kj] * ca[kj]           # avg channel
            inner = inner + w_ref[K * K + ki * K + kj] * cm[kj]   # max channel
        if o != 0:
            inner = pltpu.roll(inner, shift=(-o * W) % HW, axis=2)
            inner = inner * m_ref[pl.ds(K + ki, 1), :]
        acc = inner if acc is None else acc + inner

    # exp rides the EUP; exact divide kept (approx reciprocal ~1e-3 error).
    return 1.0 / (1.0 + jnp.exp(-acc))


def _make_conv_masks(H, W, K):
    """Host-side border-validity masks for the flat-layout 'same' conv.

    Returns (2*K, H*W) f32: row kj < K is the column mask for tap kj
    (offset kj - K//2), row K+ki is the row mask for tap ki.
    """
    pad = K // 2
    HW = H * W
    cols = jnp.arange(HW, dtype=jnp.int32) % W
    rows = jnp.arange(HW, dtype=jnp.int32) // W
    m = []
    for t in range(K):
        o = t - pad
        m.append(((cols >= -o) & (cols <= W - 1 - o)).astype(jnp.float32))
    for t in range(K):
        o = t - pad
        m.append(((rows >= -o) & (rows <= H - 1 - o)).astype(jnp.float32))
    return jnp.stack(m, axis=0)


# ---------------------------------------------------------------------------
# fused single-pass kernel: whole (C, H*W) slab per grid step
# ---------------------------------------------------------------------------
def _sa_fused_kernel(w_ref, m_ref, x_ref, o_ref, *, H, W, K, c_chunk):
    bB, C, HW = x_ref.shape
    n_full = C // c_chunk
    tail = C - n_full * c_chunk
    unrolled = n_full <= 32       # short loops stay visible to the LLO scheduler

    def chunk_f32(i):
        c0 = pl.multiple_of(i * c_chunk, c_chunk)
        return x_ref[:, pl.ds(c0, c_chunk), :].astype(jnp.float32)

    # ---- channel reduction: elementwise f32 accumulators per chunk, a single
    # cross-sublane (XLU) reduce after the loop.
    def red_body(i, carry):
        s, m = carry
        v = chunk_f32(i)
        return s + v, jnp.maximum(m, v)

    v0 = chunk_f32(0)
    if unrolled:
        ssum, smax = v0, v0
        for i in range(1, n_full):
            ssum, smax = red_body(i, (ssum, smax))
    else:
        ssum, smax = lax.fori_loop(1, n_full, red_body, (v0, v0), unroll=8)

    csum = jnp.sum(ssum, axis=1, keepdims=True)            # (bB, 1, HW)
    cmax = jnp.max(smax, axis=1, keepdims=True)
    if tail:
        vt = x_ref[:, pl.ds(n_full * c_chunk, tail), :].astype(jnp.float32)
        csum = csum + jnp.sum(vt, axis=1, keepdims=True)
        cmax = jnp.maximum(cmax, jnp.max(vt, axis=1, keepdims=True))

    avg = csum * jnp.float32(1.0 / C)                      # multiply by 1/C

    # ---- KxK conv + sigmoid on the flat maps
    scale = _conv_sigmoid_flat(w_ref, m_ref, avg, cmax, H=H, W=W, K=K)

    # ---- writeback: out = x * scale (f32 math, rounded once to out dtype).
    # Sublane broadcast of the scale map hoisted out of the chunk loop.
    scale_b = jnp.broadcast_to(scale, (bB, c_chunk, HW))

    def out_body(i, carry):
        c0 = pl.multiple_of(i * c_chunk, c_chunk)
        v = x_ref[:, pl.ds(c0, c_chunk), :].astype(jnp.float32)
        o_ref[:, pl.ds(c0, c_chunk), :] = (v * scale_b).astype(o_ref.dtype)
        return carry

    if unrolled:
        for i in range(n_full):
            out_body(i, 0)
    else:
        lax.fori_loop(0, n_full, out_body, 0, unroll=8)

    if tail:
        c0 = n_full * c_chunk
        vt = x_ref[:, pl.ds(c0, tail), :].astype(jnp.float32)
        o_ref[:, pl.ds(c0, tail), :] = (
            vt * jnp.broadcast_to(scale, (bB, tail, HW))).astype(o_ref.dtype)


def _pick_block_batch(batch, per_batch_bytes, max_block_bytes,
                      target_bytes=8 << 20):
    """Fold batch elements per grid step up to an ~8 MiB lane-dense block
    (HBM-streaming kernels only hit their roofline fraction with big tiles),
    while preferring >=2 grid steps so v7x's two TensorCores both get work."""
    cap = min(target_bytes, max_block_bytes)
    divs = [d for d in range(1, batch + 1) if batch % d == 0]
    fitting = [d for d in divs if d * per_batch_bytes <= cap] or [1]
    best = max(fitting)
    if batch // best < 2:
        two_step = [d for d in fitting if batch // d >= 2]
        if two_step and 2 * max(two_step) >= best:
            best = max(two_step)
    return best


def _fused(x_flat, w_flat, masks, *, H, W, K, block_budget, vmem_limit):
    B, C, HW = x_flat.shape
    itemsize = jnp.dtype(x_flat.dtype).itemsize
    per_batch = C * HW * itemsize
    bB = _pick_block_batch(B, per_batch, block_budget)
    # dtype-packed sublane chunks: 32 rows for f32, 64 for bf16, 128 for int8
    c_chunk = min(C, 32 * max(1, 4 // itemsize))

    kernel = functools.partial(_sa_fused_kernel, H=H, W=W, K=K, c_chunk=c_chunk)
    return pl.pallas_call(
        kernel,
        out_shape=jax.ShapeDtypeStruct((B, C, HW), x_flat.dtype),
        grid_spec=pltpu.PrefetchScalarGridSpec(
            num_scalar_prefetch=0,
            grid=(B // bB,),
            in_specs=[
                pl.BlockSpec(memory_space=pltpu.MemorySpace.SMEM),  # conv weight
                pl.BlockSpec((2 * K, HW), lambda b: (0, 0)),        # border masks
                pl.BlockSpec((bB, C, HW), lambda b: (b, 0, 0)),     # x block
            ],
            out_specs=pl.BlockSpec((bB, C, HW), lambda b: (b, 0, 0)),
        ),
        compiler_params=pltpu.CompilerParams(
            dimension_semantics=("parallel",),
            vmem_limit_bytes=vmem_limit,
        ),
    )(w_flat, masks, x_flat)


# ---------------------------------------------------------------------------
# two-pass fallback for large C*H*W blocks (channel-tiled reduce, then apply)
# ---------------------------------------------------------------------------
def _sa_scale_kernel(w_ref, m_ref, x_ref, s_ref, sum_ref, max_ref, *, H, W, K, C):
    c = pl.program_id(1)

    @pl.when(c == 0)
    def _():
        sum_ref[...] = jnp.zeros_like(sum_ref)
        max_ref[...] = jnp.full_like(max_ref, -jnp.inf)

    v = x_ref[...].astype(jnp.float32)                     # (1, c_tile, HW)
    sum_ref[...] = sum_ref[...] + jnp.sum(v, axis=1, keepdims=True)
    max_ref[...] = jnp.maximum(max_ref[...], jnp.max(v, axis=1, keepdims=True))

    @pl.when(c == pl.num_programs(1) - 1)
    def _():
        avg = sum_ref[...] * jnp.float32(1.0 / C)
        s_ref[...] = _conv_sigmoid_flat(w_ref, m_ref, avg, max_ref[...],
                                        H=H, W=W, K=K)


def _sa_apply_kernel(x_ref, s_ref, o_ref):
    v = x_ref[...].astype(jnp.float32)
    o_ref[...] = (v * s_ref[...]).astype(o_ref.dtype)


def _two_pass(x_flat, w_flat, masks, *, H, W, K, block_budget, vmem_limit):
    B, C, HW = x_flat.shape
    itemsize = jnp.dtype(x_flat.dtype).itemsize
    # Channel tile: a divisor of C that is a multiple of 8 (sublane tiling),
    # the largest whose block fits the budget (best effort otherwise).
    cands = sorted({d for d in range(8, C + 1, 8) if C % d == 0} | {C})
    fitting = [d for d in cands if d * HW * itemsize <= block_budget]
    c_tile = max(fitting) if fitting else min(cands)
    n_ct = C // c_tile

    scale = pl.pallas_call(
        functools.partial(_sa_scale_kernel, H=H, W=W, K=K, C=C),
        out_shape=jax.ShapeDtypeStruct((B, 1, HW), jnp.float32),
        grid_spec=pltpu.PrefetchScalarGridSpec(
            num_scalar_prefetch=0,
            grid=(B, n_ct),
            in_specs=[
                pl.BlockSpec(memory_space=pltpu.MemorySpace.SMEM),
                pl.BlockSpec((2 * K, HW), lambda b, c: (0, 0)),
                pl.BlockSpec((1, c_tile, HW), lambda b, c: (b, c, 0)),
            ],
            out_specs=pl.BlockSpec((1, 1, HW), lambda b, c: (b, 0, 0)),
            scratch_shapes=[pltpu.VMEM((1, 1, HW), jnp.float32),
                            pltpu.VMEM((1, 1, HW), jnp.float32)],
        ),
        compiler_params=pltpu.CompilerParams(
            dimension_semantics=("parallel", "arbitrary"),
            vmem_limit_bytes=vmem_limit,
        ),
    )(w_flat, masks, x_flat)

    return pl.pallas_call(
        _sa_apply_kernel,
        out_shape=jax.ShapeDtypeStruct((B, C, HW), x_flat.dtype),
        grid_spec=pltpu.PrefetchScalarGridSpec(
            num_scalar_prefetch=0,
            grid=(B, n_ct),
            in_specs=[
                pl.BlockSpec((1, c_tile, HW), lambda b, c: (b, c, 0)),
                pl.BlockSpec((1, 1, HW), lambda b, c: (b, 0, 0)),
            ],
            out_specs=pl.BlockSpec((1, c_tile, HW), lambda b, c: (b, c, 0)),
        ),
        compiler_params=pltpu.CompilerParams(
            dimension_semantics=("parallel", "parallel"),
            vmem_limit_bytes=vmem_limit,
        ),
    )(x_flat, scale)


# ---------------------------------------------------------------------------
# public wrapper
# ---------------------------------------------------------------------------
def spatial_attention(x, weight, kernel_size=7, *, block_bytes_limit=None):
    """x: (B, C, H, W) NCHW; weight: (1, 2, K, K) conv weight (no bias)."""
    B, C, H, W = x.shape
    K = kernel_size
    assert weight.shape == (1, 2, K, K)
    assert K % 2 == 1, "only odd kernel_size matches PyTorch same-padding"
    HW = H * W
    # TODO(synk): for H*W that is small / not a multiple of 128 (late-stage
    # 7x7 / 14x14 maps), repack a channel group into the lane axis so stores
    # stay lane-dense and pltpu.roll operates on a 128-multiple dimension.

    w_flat = weight.reshape(2 * K * K).astype(jnp.float32)
    masks = _make_conv_masks(H, W, K)
    x_flat = x.reshape(B, C, HW)                           # lane-dense layout
    itemsize = jnp.dtype(x.dtype).itemsize
    per_batch = C * HW * itemsize

    # VMEM budget with headroom: ~75% of physical capacity (48 MiB on v7x's
    # 64 MiB/TC, 96 MiB on v5e/v6e's 128 MiB), then ~1/6 of that per block to
    # cover double-buffered in+out blocks plus in-kernel f32 temporaries.
    vmem_cap = 64 * 1024 * 1024
    try:
        vmem_cap = int(pltpu.get_tpu_info().vmem_capacity_bytes)
    except Exception:
        pass
    vmem_limit = int(vmem_cap * 3 // 4)
    block_budget = max(1 << 20, (vmem_limit - (4 << 20)) // 6)
    if block_bytes_limit is not None:
        block_budget = block_bytes_limit

    if per_batch <= block_budget:
        out = _fused(x_flat, w_flat, masks, H=H, W=W, K=K,
                     block_budget=block_budget, vmem_limit=vmem_limit)
    else:
        out = _two_pass(x_flat, w_flat, masks, H=H, W=W, K=K,
                        block_budget=block_budget, vmem_limit=vmem_limit)
    return out.reshape(B, C, H, W)


def spatial_attention_ref(x, weight):
    """Pure-JAX reference (mirrors the PyTorch forward)."""
    xf = x.astype(jnp.float32)
    avg = jnp.mean(xf, axis=1, keepdims=True)
    mx = jnp.max(xf, axis=1, keepdims=True)
    cat = jnp.concatenate([avg, mx], axis=1)               # (B, 2, H, W)
    conv = jax.lax.conv_general_dilated(
        cat, weight.astype(jnp.float32),
        window_strides=(1, 1), padding="SAME",
        dimension_numbers=("NCHW", "OIHW", "NCHW"))
    scale = jax.nn.sigmoid(conv)                           # (B, 1, H, W)
    return (xf * scale).astype(x.dtype)


if __name__ == "__main__":
    key = jax.random.PRNGKey(0)
    kx, kw, kx2 = jax.random.split(key, 3)

    K = 7
    # Deterministic stand-in for nn.Conv2d kaiming-uniform init: U(-b, b),
    # b = 1/sqrt(fan_in), fan_in = 2*K*K.
    bound = 1.0 / (2.0 * K * K) ** 0.5
    weight = jax.random.uniform(kw, (1, 2, K, K), jnp.float32, -bound, bound)

    # main test: fused single-pass path
    B, C, H, W = 2, 4, 16, 16
    x = jax.random.normal(kx, (B, C, H, W), dtype=jnp.float32)
    out = jax.block_until_ready(spatial_attention(x, weight, kernel_size=K))
    ref = spatial_attention_ref(x, weight)
    assert jnp.allclose(out, ref, rtol=1e-4, atol=1e-4), (
        float(jnp.max(jnp.abs(out - ref))))

    # secondary test: force the two-pass (channel-tiled) fallback path
    B2, C2 = 2, 32
    x2 = jax.random.normal(kx2, (B2, C2, H, W), dtype=jnp.float32)
    out2 = jax.block_until_ready(
        spatial_attention(x2, weight, kernel_size=K, block_bytes_limit=12 * 1024))
    ref2 = spatial_attention_ref(x2, weight)
    assert jnp.allclose(out2, ref2, rtol=1e-4, atol=1e-4), (
        float(jnp.max(jnp.abs(out2 - ref2))))

    print("KERNEL_OK")
</pallas_src>

<mosaic_0001>
module attributes {stable_mosaic.version = 11 : i64} {
  func.func @_sa_fused_kernel(%arg0: i32, %arg1: memref<98xf32, #tpu.memory_space<smem>>, %arg2: memref<14x256xf32, #tpu.memory_space<vmem>>, %arg3: memref<1x4x256xf32, #tpu.memory_space<vmem>>, %arg4: memref<1x4x256xf32, #tpu.memory_space<vmem>>) attributes {dimension_semantics = [#tpu.dimension_semantics<parallel>], iteration_bounds = array<i64: 2>, scalar_prefetch = 0 : i64, scratch_operands = 0 : i64, tpu.core_type = #tpu.core_type<tc>, window_params = [{transform_indices = @transform_0, window_bounds = array<i64: 98>}, {pipeline_mode = #tpu.pipeline_mode<synchronous>, transform_indices = @transform_1, window_bounds = array<i64: 14, 256>}, {transform_indices = @transform_2, window_bounds = array<i64: 1, 4, 256>}, {transform_indices = @transform_3, window_bounds = array<i64: 1, 4, 256>}]} {
    %c0_i32 = arith.constant 0 : i32
    %0 = tpu.assume_multiple %c0_i32, 4 : i32
    %c0 = arith.constant 0 : index
    %1 = arith.index_cast %0 : i32 to index
    %c0_0 = arith.constant 0 : index
    %2 = vector.load %arg3[%c0, %1, %c0_0] : memref<1x4x256xf32, #tpu.memory_space<vmem>>, vector<1x4x256xf32>
    %cst = arith.constant dense<0.000000e+00> : vector<1x256xf32>
    %3 = vector.multi_reduction <add>, %2, %cst [1] : vector<1x4x256xf32> to vector<1x256xf32>
    %4 = vector.shape_cast %3 : vector<1x256xf32> to vector<1x1x256xf32>
    %cst_1 = arith.constant dense<0xFF800000> : vector<1x256xf32>
    %5 = vector.multi_reduction <maximumf>, %2, %cst_1 [1] : vector<1x4x256xf32> to vector<1x256xf32>
    %6 = vector.shape_cast %5 : vector<1x256xf32> to vector<1x1x256xf32>
    %cst_2 = arith.constant 2.500000e-01 : f32
    %7 = vector.broadcast %cst_2 : f32 to vector<1x1x256xf32>
    %8 = arith.mulf %4, %7 : vector<1x1x256xf32>
    %c3_i32 = arith.constant 3 : i32
    %9 = tpu.dynamic_rotate %8 by %c3_i32 dim 2 : vector<1x1x256xf32>, i32 -> vector<1x1x256xf32>
    %c0_3 = arith.constant 0 : index
    %c0_4 = arith.constant 0 : index
    %10 = vector.load %arg2[%c0_3, %c0_4] : memref<14x256xf32, #tpu.memory_space<vmem>>, vector<1x256xf32>
    %11 = vector.shape_cast %10 : vector<1x256xf32> to vector<1x1x256xf32>
    %12 = arith.mulf %9, %11 : vector<1x1x256xf32>
    %c2_i32 = arith.constant 2 : i32
    %13 = tpu.dynamic_rotate %8 by %c2_i32 dim 2 : vector<1x1x256xf32>, i32 -> vector<1x1x256xf32>
    %c1 = arith.constant 1 : index
    %c0_5 = arith.constant 0 : index
    %14 = vector.load %arg2[%c1, %c0_5] : memref<14x256xf32, #tpu.memory_space<vmem>>, vector<1x256xf32>
    %15 = vector.shape_cast %14 : vector<1x256xf32> to vector<1x1x256xf32>
    %16 = arith.mulf %13, %15 : vector<1x1x256xf32>
    %c1_i32 = arith.constant 1 : i32
    %17 = tpu.dynamic_rotate %8 by %c1_i32 dim 2 : vector<1x1x256xf32>, i32 -> vector<1x1x256xf32>
    %c2 = arith.constant 2 : index
    %c0_6 = arith.constant 0 : index
    %18 = vector.load %arg2[%c2, %c0_6] : memref<14x256xf32, #tpu.memory_space<vmem>>, vector<1x256xf32>
    %19 = vector.shape_cast %18 : vector<1x256xf32> to vector<1x1x256xf32>
    %20 = arith.mulf %17, %19 : vector<1x1x256xf32>
    %c255_i32 = arith.constant 255 : i32
    %21 = tpu.dynamic_rotate %8 by %c255_i32 dim 2 : vector<1x1x256xf32>, i32 -> vector<1x1x256xf32>
    %c4 = arith.constant 4 : index
    %c0_7 = arith.constant 0 : index
    %22 = vector.load %arg2[%c4, %c0_7] : memref<14x256xf32, #tpu.memory_space<vmem>>, vector<1x256xf32>
    %23 = vector.shape_cast %22 : vector<1x256xf32> to vector<1x1x256xf32>
    %24 = arith.mulf %21, %23 : vector<1x1x256xf32>
    %c254_i32 = arith.constant 254 : i32
    %25 = tpu.dynamic_rotate %8 by %c254_i32 dim 2 : vector<1x1x256xf32>, i32 -> vector<1x1x256xf32>
    %c5 = arith.constant 5 : index
    %c0_8 = arith.constant 0 : index
    %26 = vector.load %arg2[%c5, %c0_8] : memref<14x256xf32, #tpu.memory_space<vmem>>, vector<1x256xf32>
    %27 = vector.shape_cast %26 : vector<1x256xf32> to vector<1x1x256xf32>
    %28 = arith.mulf %25, %27 : vector<1x1x256xf32>
    %c253_i32 = arith.constant 253 : i32
    %29 = tpu.dynamic_rotate %8 by %c253_i32 dim 2 : vector<1x1x256xf32>, i32 -> vector<1x1x256xf32>
    %c6 = arith.constant 6 : index
    %c0_9 = arith.constant 0 : index
    %30 = vector.load %arg2[%c6, %c0_9] : memref<14x256xf32, #tpu.memory_space<vmem>>, vector<1x256xf32>
    %31 = vector.shape_cast %30 : vector<1x256xf32> to vector<1x1x256xf32>
    %32 = arith.mulf %29, %31 : vector<1x1x256xf32>
    %c3_i32_10 = arith.constant 3 : i32
    %33 = tpu.dynamic_rotate %6 by %c3_i32_10 dim 2 : vector<1x1x256xf32>, i32 -> vector<1x1x256xf32>
    %c0_11 = arith.constant 0 : index
    %c0_12 = arith.constant 0 : index
    %34 = vector.load %arg2[%c0_11, %c0_12] : memref<14x256xf32, #tpu.memory_space<vmem>>, vector<1x256xf32>
    %35 = vector.shape_cast %34 : vector<1x256xf32> to vector<1x1x256xf32>
    %36 = arith.mulf %33, %35 : vector<1x1x256xf32>
    %c2_i32_13 = arith.constant 2 : i32
    %37 = tpu.dynamic_rotate %6 by %c2_i32_13 dim 2 : vector<1x1x256xf32>, i32 -> vector<1x1x256xf32>
    %c1_14 = arith.constant 1 : index
    %c0_15 = arith.constant 0 : index
    %38 = vector.load %arg2[%c1_14, %c0_15] : memref<14x256xf32, #tpu.memory_space<vmem>>, vector<1x256xf32>
    %39 = vector.shape_cast %38 : vector<1x256xf32> to vector<1x1x256xf32>
    %40 = arith.mulf %37, %39 : vector<1x1x256xf32>
    %c1_i32_16 = arith.constant 1 : i32
    %41 = tpu.dynamic_rotate %6 by %c1_i32_16 dim 2 : vector<1x1x256xf32>, i32 -> vector<1x1x256xf32>
    %c2_17 = arith.constant 2 : index
    %c0_18 = arith.constant 0 : index
    %42 = vector.load %arg2[%c2_17, %c0_18] : memref<14x256xf32, #tpu.memory_space<vmem>>, vector<1x256xf32>
    %43 = vector.shape_cast %42 : vector<1x256xf32> to vector<1x1x256xf32>
    %44 = arith.mulf %41, %43 : vector<1x1x256xf32>
    %c255_i32_19 = arith.constant 255 : i32
    %45 = tpu.dynamic_rotate %6 by %c255_i32_19 dim 2 : vector<1x1x256xf32>, i32 -> vector<1x1x256xf32>
    %c4_20 = arith.constant 4 : index
    %c0_21 = arith.constant 0 : index
    %46 = vector.load %arg2[%c4_20, %c0_21] : memref<14x256xf32, #tpu.memory_space<vmem>>, vector<1x256xf32>
    %47 = vector.shape_cast %46 : vector<1x256xf32> to vector<1x1x256xf32>
    %48 = arith.mulf %45, %47 : vector<1x1x256xf32>
    %c254_i32_22 = arith.constant 254 : i32
    %49 = tpu.dynamic_rotate %6 by %c254_i32_22 dim 2 : vector<1x1x256xf32>, i32 -> vector<1x1x256xf32>
    %c5_23 = arith.constant 5 : index
    %c0_24 = arith.constant 0 : index
    %50 = vector.load %arg2[%c5_23, %c0_24] : memref<14x256xf32, #tpu.memory_space<vmem>>, vector<1x256xf32>
    %51 = vector.shape_cast %50 : vector<1x256xf32> to vector<1x1x256xf32>
    %52 = arith.mulf %49, %51 : vector<1x1x256xf32>
    %c253_i32_25 = arith.constant 253 : i32
    %53 = tpu.dynamic_rotate %6 by %c253_i32_25 dim 2 : vector<1x1x256xf32>, i32 -> vector<1x1x256xf32>
    %c6_26 = arith.constant 6 : index
    %c0_27 = arith.constant 0 : index
    %54 = vector.load %arg2[%c6_26, %c0_27] : memref<14x256xf32, #tpu.memory_space<vmem>>, vector<1x256xf32>
    %55 = vector.shape_cast %54 : vector<1x256xf32> to vector<1x1x256xf32>
    %56 = arith.mulf %53, %55 : vector<1x1x256xf32>
    %c0_28 = arith.constant 0 : index
    %57 = memref.load %arg1[%c0_28] : memref<98xf32, #tpu.memory_space<smem>>
    %58 = vector.broadcast %57 : f32 to vector<1x1x256xf32>
    %59 = arith.mulf %58, %12 : vector<1x1x256xf32>
    %c49 = arith.constant 49 : index
    %60 = memref.load %arg1[%c49] : memref<98xf32, #tpu.memory_space<smem>>
    %61 = vector.broadcast %60 : f32 to vector<1x1x256xf32>
    %62 = arith.mulf %61, %36 : vector<1x1x256xf32>
    %63 = arith.addf %59, %62 : vector<1x1x256xf32>
    %c1_29 = arith.constant 1 : index
    %64 = memref.load %arg1[%c1_29] : memref<98xf32, #tpu.memory_space<smem>>
    %65 = vector.broadcast %64 : f32 to vector<1x1x256xf32>
    %66 = arith.mulf %65, %16 : vector<1x1x256xf32>
    %67 = arith.addf %63, %66 : vector<1x1x256xf32>
    %c50 = arith.constant 50 : index
    %68 = memref.load %arg1[%c50] : memref<98xf32, #tpu.memory_space<smem>>
    %69 = vector.broadcast %68 : f32 to vector<1x1x256xf32>
    %70 = arith.mulf %69, %40 : vector<1x1x256xf32>
    %71 = arith.addf %67, %70 : vector<1x1x256xf32>
    %c2_30 = arith.constant 2 : index
    %72 = memref.load %arg1[%c2_30] : memref<98xf32, #tpu.memory_space<smem>>
    %73 = vector.broadcast %72 : f32 to vector<1x1x256xf32>
    %74 = arith.mulf %73, %20 : vector<1x1x256xf32>
    %75 = arith.addf %71, %74 : vector<1x1x256xf32>
    %c51 = arith.constant 51 : index
    %76 = memref.load %arg1[%c51] : memref<98xf32, #tpu.memory_space<smem>>
    %77 = vector.broadcast %76 : f32 to vector<1x1x256xf32>
    %78 = arith.mulf %77, %44 : vector<1x1x256xf32>
    %79 = arith.addf %75, %78 : vector<1x1x256xf32>
    %c3 = arith.constant 3 : index
    %80 = memref.load %arg1[%c3] : memref<98xf32, #tpu.memory_space<smem>>
    %81 = vector.broadcast %80 : f32 to vector<1x1x256xf32>
    %82 = arith.mulf %81, %8 : vector<1x1x256xf32>
    %83 = arith.addf %79, %82 : vector<1x1x256xf32>
    %c52 = arith.constant 52 : index
    %84 = memref.load %arg1[%c52] : memref<98xf32, #tpu.memory_space<smem>>
    %85 = vector.broadcast %84 : f32 to vector<1x1x256xf32>
    %86 = arith.mulf %85, %6 : vector<1x1x256xf32>
    %87 = arith.addf %83, %86 : vector<1x1x256xf32>
    %c4_31 = arith.constant 4 : index
    %88 = memref.load %arg1[%c4_31] : memref<98xf32, #tpu.memory_space<smem>>
    %89 = vector.broadcast %88 : f32 to vector<1x1x256xf32>
    %90 = arith.mulf %89, %24 : vector<1x1x256xf32>
    %91 = arith.addf %87, %90 : vector<1x1x256xf32>
    %c53 = arith.constant 53 : index
    %92 = memref.load %arg1[%c53] : memref<98xf32, #tpu.memory_space<smem>>
    %93 = vector.broadcast %92 : f32 to vector<1x1x256xf32>
    %94 = arith.mulf %93, %48 : vector<1x1x256xf32>
    %95 = arith.addf %91, %94 : vector<1x1x256xf32>
    %c5_32 = arith.constant 5 : index
    %96 = memref.load %arg1[%c5_32] : memref<98xf32, #tpu.memory_space<smem>>
    %97 = vector.broadcast %96 : f32 to vector<1x1x256xf32>
    %98 = arith.mulf %97, %28 : vector<1x1x256xf32>
    %99 = arith.addf %95, %98 : vector<1x1x256xf32>
    %c54 = arith.constant 54 : index
    %100 = memref.load %arg1[%c54] : memref<98xf32, #tpu.memory_space<smem>>
    %101 = vector.broadcast %100 : f32 to vector<1x1x256xf32>
    %102 = arith.mulf %101, %52 : vector<1x1x256xf32>
    %103 = arith.addf %99, %102 : vector<1x1x256xf32>
    %c6_33 = arith.constant 6 : index
    %104 = memref.load %arg1[%c6_33] : memref<98xf32, #tpu.memory_space<smem>>
    %105 = vector.broadcast %104 : f32 to vector<1x1x256xf32>
    %106 = arith.mulf %105, %32 : vector<1x1x256xf32>
    %107 = arith.addf %103, %106 : vector<1x1x256xf32>
    %c55 = arith.constant 55 : index
    %108 = memref.load %arg1[%c55] : memref<98xf32, #tpu.memory_space<smem>>
    %109 = vector.broadcast %108 : f32 to vector<1x1x256xf32>
    %110 = arith.mulf %109, %56 : vector<1x1x256xf32>
    %111 = arith.addf %107, %110 : vector<1x1x256xf32>
    %c48_i32 = arith.constant 48 : i32
    %112 = tpu.dynamic_rotate %111 by %c48_i32 dim 2 : vector<1x1x256xf32>, i32 -> vector<1x1x256xf32>
    %c7 = arith.constant 7 : index
    %c0_34 = arith.constant 0 : index
    %113 = vector.load %arg2[%c7, %c0_34] : memref<14x256xf32, #tpu.memory_space<vmem>>, vector<1x256xf32>
    %114 = vector.shape_cast %113 : vector<1x256xf32> to vector<1x1x256xf32>
    %115 = arith.mulf %112, %114 : vector<1x1x256xf32>
    %c7_35 = arith.constant 7 : index
    %116 = memref.load %arg1[%c7_35] : memref<98xf32, #tpu.memory_space<smem>>
    %117 = vector.broadcast %116 : f32 to vector<1x1x256xf32>
    %118 = arith.mulf %117, %12 : vector<1x1x256xf32>
    %c56 = arith.constant 56 : index
    %119 = memref.load %arg1[%c56] : memref<98xf32, #tpu.memory_space<smem>>
    %120 = vector.broadcast %119 : f32 to vector<1x1x256xf32>
    %121 = arith.mulf %120, %36 : vector<1x1x256xf32>
    %122 = arith.addf %118, %121 : vector<1x1x256xf32>
    %c8 = arith.constant 8 : index
    %123 = memref.load %arg1[%c8] : memref<98xf32, #tpu.memory_space<smem>>
    %124 = vector.broadcast %123 : f32 to vector<1x1x256xf32>
    %125 = arith.mulf %124, %16 : vector<1x1x256xf32>
    %126 = arith.addf %122, %125 : vector<1x1x256xf32>
    %c57 = arith.constant 57 : index
    %127 = memref.load %arg1[%c57] : memref<98xf32, #tpu.memory_space<smem>>
    %128 = vector.broadcast %127 : f32 to vector<1x1x256xf32>
    %129 = arith.mulf %128, %40 : vector<1x1x256xf32>
    %130 = arith.addf %126, %129 : vector<1x1x256xf32>
    %c9 = arith.constant 9 : index
    %131 = memref.load %arg1[%c9] : memref<98xf32, #tpu.memory_space<smem>>
    %132 = vector.broadcast %131 : f32 to vector<1x1x256xf32>
    %133 = arith.mulf %132, %20 : vector<1x1x256xf32>
    %134 = arith.addf %130, %133 : vector<1x1x256xf32>
    %c58 = arith.constant 58 : index
    %135 = memref.load %arg1[%c58] : memref<98xf32, #tpu.memory_space<smem>>
    %136 = vector.broadcast %135 : f32 to vector<1x1x256xf32>
    %137 = arith.mulf %136, %44 : vector<1x1x256xf32>
    %138 = arith.addf %134, %137 : vector<1x1x256xf32>
    %c10 = arith.constant 10 : index
    %139 = memref.load %arg1[%c10] : memref<98xf32, #tpu.memory_space<smem>>
    %140 = vector.broadcast %139 : f32 to vector<1x1x256xf32>
    %141 = arith.mulf %140, %8 : vector<1x1x256xf32>
    %142 = arith.addf %138, %141 : vector<1x1x256xf32>
    %c59 = arith.constant 59 : index
    %143 = memref.load %arg1[%c59] : memref<98xf32, #tpu.memory_space<smem>>
    %144 = vector.broadcast %143 : f32 to vector<1x1x256xf32>
    %145 = arith.mulf %144, %6 : vector<1x1x256xf32>
    %146 = arith.addf %142, %145 : vector<1x1x256xf32>
    %c11 = arith.constant 11 : index
    %147 = memref.load %arg1[%c11] : memref<98xf32, #tpu.memory_space<smem>>
    %148 = vector.broadcast %147 : f32 to vector<1x1x256xf32>
    %149 = arith.mulf %148, %24 : vector<1x1x256xf32>
    %150 = arith.addf %146, %149 : vector<1x1x256xf32>
    %c60 = arith.constant 60 : index
    %151 = memref.load %arg1[%c60] : memref<98xf32, #tpu.memory_space<smem>>
    %152 = vector.broadcast %151 : f32 to vector<1x1x256xf32>
    %153 = arith.mulf %152, %48 : vector<1x1x256xf32>
    %154 = arith.addf %150, %153 : vector<1x1x256xf32>
    %c12 = arith.constant 12 : index
    %155 = memref.load %arg1[%c12] : memref<98xf32, #tpu.memory_space<smem>>
    %156 = vector.broadcast %155 : f32 to vector<1x1x256xf32>
    %157 = arith.mulf %156, %28 : vector<1x1x256xf32>
    %158 = arith.addf %154, %157 : vector<1x1x256xf32>
    %c61 = arith.constant 61 : index
    %159 = memref.load %arg1[%c61] : memref<98xf32, #tpu.memory_space<smem>>
    %160 = vector.broadcast %159 : f32 to vector<1x1x256xf32>
    %161 = arith.mulf %160, %52 : vector<1x1x256xf32>
    %162 = arith.addf %158, %161 : vector<1x1x256xf32>
    %c13 = arith.constant 13 : index
    %163 = memref.load %arg1[%c13] : memref<98xf32, #tpu.memory_space<smem>>
    %164 = vector.broadcast %163 : f32 to vector<1x1x256xf32>
    %165 = arith.mulf %164, %32 : vector<1x1x256xf32>
    %166 = arith.addf %162, %165 : vector<1x1x256xf32>
    %c62 = arith.constant 62 : index
    %167 = memref.load %arg1[%c62] : memref<98xf32, #tpu.memory_space<smem>>
    %168 = vector.broadcast %167 : f32 to vector<1x1x256xf32>
    %169 = arith.mulf %168, %56 : vector<1x1x256xf32>
    %170 = arith.addf %166, %169 : vector<1x1x256xf32>
    %c32_i32 = arith.constant 32 : i32
    %171 = tpu.dynamic_rotate %170 by %c32_i32 dim 2 : vector<1x1x256xf32>, i32 -> vector<1x1x256xf32>
    %c8_36 = arith.constant 8 : index
    %c0_37 = arith.constant 0 : index
    %172 = vector.load %arg2[%c8_36, %c0_37] : memref<14x256xf32, #tpu.memory_space<vmem>>, vector<1x256xf32>
    %173 = vector.shape_cast %172 : vector<1x256xf32> to vector<1x1x256xf32>
    %174 = arith.mulf %171, %173 : vector<1x1x256xf32>
    %175 = arith.addf %115, %174 : vector<1x1x256xf32>
    %c14 = arith.constant 14 : index
    %176 = memref.load %arg1[%c14] : memref<98xf32, #tpu.memory_space<smem>>
    %177 = vector.broadcast %176 : f32 to vector<1x1x256xf32>
    %178 = arith.mulf %177, %12 : vector<1x1x256xf32>
    %c63 = arith.constant 63 : index
    %179 = memref.load %arg1[%c63] : memref<98xf32, #tpu.memory_space<smem>>
    %180 = vector.broadcast %179 : f32 to vector<1x1x256xf32>
    %181 = arith.mulf %180, %36 : vector<1x1x256xf32>
    %182 = arith.addf %178, %181 : vector<1x1x256xf32>
    %c15 = arith.constant 15 : index
    %183 = memref.load %arg1[%c15] : memref<98xf32, #tpu.memory_space<smem>>
    %184 = vector.broadcast %183 : f32 to vector<1x1x256xf32>
    %185 = arith.mulf %184, %16 : vector<1x1x256xf32>
    %186 = arith.addf %182, %185 : vector<1x1x256xf32>
    %c64 = arith.constant 64 : index
    %187 = memref.load %arg1[%c64] : memref<98xf32, #tpu.memory_space<smem>>
    %188 = vector.broadcast %187 : f32 to vector<1x1x256xf32>
    %189 = arith.mulf %188, %40 : vector<1x1x256xf32>
    %190 = arith.addf %186, %189 : vector<1x1x256xf32>
    %c16 = arith.constant 16 : index
    %191 = memref.load %arg1[%c16] : memref<98xf32, #tpu.memory_space<smem>>
    %192 = vector.broadcast %191 : f32 to vector<1x1x256xf32>
    %193 = arith.mulf %192, %20 : vector<1x1x256xf32>
    %194 = arith.addf %190, %193 : vector<1x1x256xf32>
    %c65 = arith.constant 65 : index
    %195 = memref.load %arg1[%c65] : memref<98xf32, #tpu.memory_space<smem>>
    %196 = vector.broadcast %195 : f32 to vector<1x1x256xf32>
    %197 = arith.mulf %196, %44 : vector<1x1x256xf32>
    %198 = arith.addf %194, %197 : vector<1x1x256xf32>
    %c17 = arith.constant 17 : index
    %199 = memref.load %arg1[%c17] : memref<98xf32, #tpu.memory_space<smem>>
    %200 = vector.broadcast %199 : f32 to vector<1x1x256xf32>
    %201 = arith.mulf %200, %8 : vector<1x1x256xf32>
    %202 = arith.addf %198, %201 : vector<1x1x256xf32>
    %c66 = arith.constant 66 : index
    %203 = memref.load %arg1[%c66] : memref<98xf32, #tpu.memory_space<smem>>
    %204 = vector.broadcast %203 : f32 to vector<1x1x256xf32>
    %205 = arith.mulf %204, %6 : vector<1x1x256xf32>
    %206 = arith.addf %202, %205 : vector<1x1x256xf32>
    %c18 = arith.constant 18 : index
    %207 = memref.load %arg1[%c18] : memref<98xf32, #tpu.memory_space<smem>>
    %208 = vector.broadcast %207 : f32 to vector<1x1x256xf32>
    %209 = arith.mulf %208, %24 : vector<1x1x256xf32>
    %210 = arith.addf %206, %209 : vector<1x1x256xf32>
    %c67 = arith.constant 67 : index
    %211 = memref.load %arg1[%c67] : memref<98xf32, #tpu.memory_space<smem>>
    %212 = vector.broadcast %211 : f32 to vector<1x1x256xf32>
    %213 = arith.mulf %212, %48 : vector<1x1x256xf32>
    %214 = arith.addf %210, %213 : vector<1x1x256xf32>
    %c19 = arith.constant 19 : index
    %215 = memref.load %arg1[%c19] : memref<98xf32, #tpu.memory_space<smem>>
    %216 = vector.broadcast %215 : f32 to vector<1x1x256xf32>
    %217 = arith.mulf %216, %28 : vector<1x1x256xf32>
    %218 = arith.addf %214, %217 : vector<1x1x256xf32>
    %c68 = arith.constant 68 : index
    %219 = memref.load %arg1[%c68] : memref<98xf32, #tpu.memory_space<smem>>
    %220 = vector.broadcast %219 : f32 to vector<1x1x256xf32>
    %221 = arith.mulf %220, %52 : vector<1x1x256xf32>
    %222 = arith.addf %218, %221 : vector<1x1x256xf32>
    %c20 = arith.constant 20 : index
    %223 = memref.load %arg1[%c20] : memref<98xf32, #tpu.memory_space<smem>>
    %224 = vector.broadcast %223 : f32 to vector<1x1x256xf32>
    %225 = arith.mulf %224, %32 : vector<1x1x256xf32>
    %226 = arith.addf %222, %225 : vector<1x1x256xf32>
    %c69 = arith.constant 69 : index
    %227 = memref.load %arg1[%c69] : memref<98xf32, #tpu.memory_space<smem>>
    %228 = vector.broadcast %227 : f32 to vector<1x1x256xf32>
    %229 = arith.mulf %228, %56 : vector<1x1x256xf32>
    %230 = arith.addf %226, %229 : vector<1x1x256xf32>
    %c16_i32 = arith.constant 16 : i32
    %231 = tpu.dynamic_rotate %230 by %c16_i32 dim 2 : vector<1x1x256xf32>, i32 -> vector<1x1x256xf32>
    %c9_38 = arith.constant 9 : index
    %c0_39 = arith.constant 0 : index
    %232 = vector.load %arg2[%c9_38, %c0_39] : memref<14x256xf32, #tpu.memory_space<vmem>>, vector<1x256xf32>
    %233 = vector.shape_cast %232 : vector<1x256xf32> to vector<1x1x256xf32>
    %234 = arith.mulf %231, %233 : vector<1x1x256xf32>
    %235 = arith.addf %175, %234 : vector<1x1x256xf32>
    %c21 = arith.constant 21 : index
    %236 = memref.load %arg1[%c21] : memref<98xf32, #tpu.memory_space<smem>>
    %237 = vector.broadcast %236 : f32 to vector<1x1x256xf32>
    %238 = arith.mulf %237, %12 : vector<1x1x256xf32>
    %c70 = arith.constant 70 : index
    %239 = memref.load %arg1[%c70] : memref<98xf32, #tpu.memory_space<smem>>
    %240 = vector.broadcast %239 : f32 to vector<1x1x256xf32>
    %241 = arith.mulf %240, %36 : vector<1x1x256xf32>
    %242 = arith.addf %238, %241 : vector<1x1x256xf32>
    %c22 = arith.constant 22 : index
    %243 = memref.load %arg1[%c22] : memref<98xf32, #tpu.memory_space<smem>>
    %244 = vector.broadcast %243 : f32 to vector<1x1x256xf32>
    %245 = arith.mulf %244, %16 : vector<1x1x256xf32>
    %246 = arith.addf %242, %245 : vector<1x1x256xf32>
    %c71 = arith.constant 71 : index
    %247 = memref.load %arg1[%c71] : memref<98xf32, #tpu.memory_space<smem>>
    %248 = vector.broadcast %247 : f32 to vector<1x1x256xf32>
    %249 = arith.mulf %248, %40 : vector<1x1x256xf32>
    %250 = arith.addf %246, %249 : vector<1x1x256xf32>
    %c23 = arith.constant 23 : index
    %251 = memref.load %arg1[%c23] : memref<98xf32, #tpu.memory_space<smem>>
    %252 = vector.broadcast %251 : f32 to vector<1x1x256xf32>
    %253 = arith.mulf %252, %20 : vector<1x1x256xf32>
    %254 = arith.addf %250, %253 : vector<1x1x256xf32>
    %c72 = arith.constant 72 : index
    %255 = memref.load %arg1[%c72] : memref<98xf32, #tpu.memory_space<smem>>
    %256 = vector.broadcast %255 : f32 to vector<1x1x256xf32>
    %257 = arith.mulf %256, %44 : vector<1x1x256xf32>
    %258 = arith.addf %254, %257 : vector<1x1x256xf32>
    %c24 = arith.constant 24 : index
    %259 = memref.load %arg1[%c24] : memref<98xf32, #tpu.memory_space<smem>>
    %260 = vector.broadcast %259 : f32 to vector<1x1x256xf32>
    %261 = arith.mulf %260, %8 : vector<1x1x256xf32>
    %262 = arith.addf %258, %261 : vector<1x1x256xf32>
    %c73 = arith.constant 73 : index
    %263 = memref.load %arg1[%c73] : memref<98xf32, #tpu.memory_space<smem>>
    %264 = vector.broadcast %263 : f32 to vector<1x1x256xf32>
    %265 = arith.mulf %264, %6 : vector<1x1x256xf32>
    %266 = arith.addf %262, %265 : vector<1x1x256xf32>
    %c25 = arith.constant 25 : index
    %267 = memref.load %arg1[%c25] : memref<98xf32, #tpu.memory_space<smem>>
    %268 = vector.broadcast %267 : f32 to vector<1x1x256xf32>
    %269 = arith.mulf %268, %24 : vector<1x1x256xf32>
    %270 = arith.addf %266, %269 : vector<1x1x256xf32>
    %c74 = arith.constant 74 : index
    %271 = memref.load %arg1[%c74] : memref<98xf32, #tpu.memory_space<smem>>
    %272 = vector.broadcast %271 : f32 to vector<1x1x256xf32>
    %273 = arith.mulf %272, %48 : vector<1x1x256xf32>
    %274 = arith.addf %270, %273 : vector<1x1x256xf32>
    %c26 = arith.constant 26 : index
    %275 = memref.load %arg1[%c26] : memref<98xf32, #tpu.memory_space<smem>>
    %276 = vector.broadcast %275 : f32 to vector<1x1x256xf32>
    %277 = arith.mulf %276, %28 : vector<1x1x256xf32>
    %278 = arith.addf %274, %277 : vector<1x1x256xf32>
    %c75 = arith.constant 75 : index
    %279 = memref.load %arg1[%c75] : memref<98xf32, #tpu.memory_space<smem>>
    %280 = vector.broadcast %279 : f32 to vector<1x1x256xf32>
    %281 = arith.mulf %280, %52 : vector<1x1x256xf32>
    %282 = arith.addf %278, %281 : vector<1x1x256xf32>
    %c27 = arith.constant 27 : index
    %283 = memref.load %arg1[%c27] : memref<98xf32, #tpu.memory_space<smem>>
    %284 = vector.broadcast %283 : f32 to vector<1x1x256xf32>
    %285 = arith.mulf %284, %32 : vector<1x1x256xf32>
    %286 = arith.addf %282, %285 : vector<1x1x256xf32>
    %c76 = arith.constant 76 : index
    %287 = memref.load %arg1[%c76] : memref<98xf32, #tpu.memory_space<smem>>
    %288 = vector.broadcast %287 : f32 to vector<1x1x256xf32>
    %289 = arith.mulf %288, %56 : vector<1x1x256xf32>
    %290 = arith.addf %286, %289 : vector<1x1x256xf32>
    %291 = arith.addf %235, %290 : vector<1x1x256xf32>
    %c28 = arith.constant 28 : index
    %292 = memref.load %arg1[%c28] : memref<98xf32, #tpu.memory_space<smem>>
    %293 = vector.broadcast %292 : f32 to vector<1x1x256xf32>
    %294 = arith.mulf %293, %12 : vector<1x1x256xf32>
    %c77 = arith.constant 77 : index
    %295 = memref.load %arg1[%c77] : memref<98xf32, #tpu.memory_space<smem>>
    %296 = vector.broadcast %295 : f32 to vector<1x1x256xf32>
    %297 = arith.mulf %296, %36 : vector<1x1x256xf32>
    %298 = arith.addf %294, %297 : vector<1x1x256xf32>
    %c29 = arith.constant 29 : index
    %299 = memref.load %arg1[%c29] : memref<98xf32, #tpu.memory_space<smem>>
    %300 = vector.broadcast %299 : f32 to vector<1x1x256xf32>
    %301 = arith.mulf %300, %16 : vector<1x1x256xf32>
    %302 = arith.addf %298, %301 : vector<1x1x256xf32>
    %c78 = arith.constant 78 : index
    %303 = memref.load %arg1[%c78] : memref<98xf32, #tpu.memory_space<smem>>
    %304 = vector.broadcast %303 : f32 to vector<1x1x256xf32>
    %305 = arith.mulf %304, %40 : vector<1x1x256xf32>
    %306 = arith.addf %302, %305 : vector<1x1x256xf32>
    %c30 = arith.constant 30 : index
    %307 = memref.load %arg1[%c30] : memref<98xf32, #tpu.memory_space<smem>>
    %308 = vector.broadcast %307 : f32 to vector<1x1x256xf32>
    %309 = arith.mulf %308, %20 : vector<1x1x256xf32>
    %310 = arith.addf %306, %309 : vector<1x1x256xf32>
    %c79 = arith.constant 79 : index
    %311 = memref.load %arg1[%c79] : memref<98xf32, #tpu.memory_space<smem>>
    %312 = vector.broadcast %311 : f32 to vector<1x1x256xf32>
    %313 = arith.mulf %312, %44 : vector<1x1x256xf32>
    %314 = arith.addf %310, %313 : vector<1x1x256xf32>
    %c31 = arith.constant 31 : index
    %315 = memref.load %arg1[%c31] : memref<98xf32, #tpu.memory_space<smem>>
    %316 = vector.broadcast %315 : f32 to vector<1x1x256xf32>
    %317 = arith.mulf %316, %8 : vector<1x1x256xf32>
    %318 = arith.addf %314, %317 : vector<1x1x256xf32>
    %c80 = arith.constant 80 : index
    %319 = memref.load %arg1[%c80] : memref<98xf32, #tpu.memory_space<smem>>
    %320 = vector.broadcast %319 : f32 to vector<1x1x256xf32>
    %321 = arith.mulf %320, %6 : vector<1x1x256xf32>
    %322 = arith.addf %318, %321 : vector<1x1x256xf32>
    %c32 = arith.constant 32 : index
    %323 = memref.load %arg1[%c32] : memref<98xf32, #tpu.memory_space<smem>>
    %324 = vector.broadcast %323 : f32 to vector<1x1x256xf32>
    %325 = arith.mulf %324, %24 : vector<1x1x256xf32>
    %326 = arith.addf %322, %325 : vector<1x1x256xf32>
    %c81 = arith.constant 81 : index
    %327 = memref.load %arg1[%c81] : memref<98xf32, #tpu.memory_space<smem>>
    %328 = vector.broadcast %327 : f32 to vector<1x1x256xf32>
    %329 = arith.mulf %328, %48 : vector<1x1x256xf32>
    %330 = arith.addf %326, %329 : vector<1x1x256xf32>
    %c33 = arith.constant 33 : index
    %331 = memref.load %arg1[%c33] : memref<98xf32, #tpu.memory_space<smem>>
    %332 = vector.broadcast %331 : f32 to vector<1x1x256xf32>
    %333 = arith.mulf %332, %28 : vector<1x1x256xf32>
    %334 = arith.addf %330, %333 : vector<1x1x256xf32>
    %c82 = arith.constant 82 : index
    %335 = memref.load %arg1[%c82] : memref<98xf32, #tpu.memory_space<smem>>
    %336 = vector.broadcast %335 : f32 to vector<1x1x256xf32>
    %337 = arith.mulf %336, %52 : vector<1x1x256xf32>
    %338 = arith.addf %334, %337 : vector<1x1x256xf32>
    %c34 = arith.constant 34 : index
    %339 = memref.load %arg1[%c34] : memref<98xf32, #tpu.memory_space<smem>>
    %340 = vector.broadcast %339 : f32 to vector<1x1x256xf32>
    %341 = arith.mulf %340, %32 : vector<1x1x256xf32>
    %342 = arith.addf %338, %341 : vector<1x1x256xf32>
    %c83 = arith.constant 83 : index
    %343 = memref.load %arg1[%c83] : memref<98xf32, #tpu.memory_space<smem>>
    %344 = vector.broadcast %343 : f32 to vector<1x1x256xf32>
    %345 = arith.mulf %344, %56 : vector<1x1x256xf32>
    %346 = arith.addf %342, %345 : vector<1x1x256xf32>
    %c240_i32 = arith.constant 240 : i32
    %347 = tpu.dynamic_rotate %346 by %c240_i32 dim 2 : vector<1x1x256xf32>, i32 -> vector<1x1x256xf32>
    %c11_40 = arith.constant 11 : index
    %c0_41 = arith.constant 0 : index
    %348 = vector.load %arg2[%c11_40, %c0_41] : memref<14x256xf32, #tpu.memory_space<vmem>>, vector<1x256xf32>
    %349 = vector.shape_cast %348 : vector<1x256xf32> to vector<1x1x256xf32>
    %350 = arith.mulf %347, %349 : vector<1x1x256xf32>
    %351 = arith.addf %291, %350 : vector<1x1x256xf32>
    %c35 = arith.constant 35 : index
    %352 = memref.load %arg1[%c35] : memref<98xf32, #tpu.memory_space<smem>>
    %353 = vector.broadcast %352 : f32 to vector<1x1x256xf32>
    %354 = arith.mulf %353, %12 : vector<1x1x256xf32>
    %c84 = arith.constant 84 : index
    %355 = memref.load %arg1[%c84] : memref<98xf32, #tpu.memory_space<smem>>
    %356 = vector.broadcast %355 : f32 to vector<1x1x256xf32>
    %357 = arith.mulf %356, %36 : vector<1x1x256xf32>
    %358 = arith.addf %354, %357 : vector<1x1x256xf32>
    %c36 = arith.constant 36 : index
    %359 = memref.load %arg1[%c36] : memref<98xf32, #tpu.memory_space<smem>>
    %360 = vector.broadcast %359 : f32 to vector<1x1x256xf32>
    %361 = arith.mulf %360, %16 : vector<1x1x256xf32>
    %362 = arith.addf %358, %361 : vector<1x1x256xf32>
    %c85 = arith.constant 85 : index
    %363 = memref.load %arg1[%c85] : memref<98xf32, #tpu.memory_space<smem>>
    %364 = vector.broadcast %363 : f32 to vector<1x1x256xf32>
    %365 = arith.mulf %364, %40 : vector<1x1x256xf32>
    %366 = arith.addf %362, %365 : vector<1x1x256xf32>
    %c37 = arith.constant 37 : index
    %367 = memref.load %arg1[%c37] : memref<98xf32, #tpu.memory_space<smem>>
    %368 = vector.broadcast %367 : f32 to vector<1x1x256xf32>
    %369 = arith.mulf %368, %20 : vector<1x1x256xf32>
    %370 = arith.addf %366, %369 : vector<1x1x256xf32>
    %c86 = arith.constant 86 : index
    %371 = memref.load %arg1[%c86] : memref<98xf32, #tpu.memory_space<smem>>
    %372 = vector.broadcast %371 : f32 to vector<1x1x256xf32>
    %373 = arith.mulf %372, %44 : vector<1x1x256xf32>
    %374 = arith.addf %370, %373 : vector<1x1x256xf32>
    %c38 = arith.constant 38 : index
    %375 = memref.load %arg1[%c38] : memref<98xf32, #tpu.memory_space<smem>>
    %376 = vector.broadcast %375 : f32 to vector<1x1x256xf32>
    %377 = arith.mulf %376, %8 : vector<1x1x256xf32>
    %378 = arith.addf %374, %377 : vector<1x1x256xf32>
    %c87 = arith.constant 87 : index
    %379 = memref.load %arg1[%c87] : memref<98xf32, #tpu.memory_space<smem>>
    %380 = vector.broadcast %379 : f32 to vector<1x1x256xf32>
    %381 = arith.mulf %380, %6 : vector<1x1x256xf32>
    %382 = arith.addf %378, %381 : vector<1x1x256xf32>
    %c39 = arith.constant 39 : index
    %383 = memref.load %arg1[%c39] : memref<98xf32, #tpu.memory_space<smem>>
    %384 = vector.broadcast %383 : f32 to vector<1x1x256xf32>
    %385 = arith.mulf %384, %24 : vector<1x1x256xf32>
    %386 = arith.addf %382, %385 : vector<1x1x256xf32>
    %c88 = arith.constant 88 : index
    %387 = memref.load %arg1[%c88] : memref<98xf32, #tpu.memory_space<smem>>
    %388 = vector.broadcast %387 : f32 to vector<1x1x256xf32>
    %389 = arith.mulf %388, %48 : vector<1x1x256xf32>
    %390 = arith.addf %386, %389 : vector<1x1x256xf32>
    %c40 = arith.constant 40 : index
    %391 = memref.load %arg1[%c40] : memref<98xf32, #tpu.memory_space<smem>>
    %392 = vector.broadcast %391 : f32 to vector<1x1x256xf32>
    %393 = arith.mulf %392, %28 : vector<1x1x256xf32>
    %394 = arith.addf %390, %393 : vector<1x1x256xf32>
    %c89 = arith.constant 89 : index
    %395 = memref.load %arg1[%c89] : memref<98xf32, #tpu.memory_space<smem>>
    %396 = vector.broadcast %395 : f32 to vector<1x1x256xf32>
    %397 = arith.mulf %396, %52 : vector<1x1x256xf32>
    %398 = arith.addf %394, %397 : vector<1x1x256xf32>
    %c41 = arith.constant 41 : index
    %399 = memref.load %arg1[%c41] : memref<98xf32, #tpu.memory_space<smem>>
    %400 = vector.broadcast %399 : f32 to vector<1x1x256xf32>
    %401 = arith.mulf %400, %32 : vector<1x1x256xf32>
    %402 = arith.addf %398, %401 : vector<1x1x256xf32>
    %c90 = arith.constant 90 : index
    %403 = memref.load %arg1[%c90] : memref<98xf32, #tpu.memory_space<smem>>
    %404 = vector.broadcast %403 : f32 to vector<1x1x256xf32>
    %405 = arith.mulf %404, %56 : vector<1x1x256xf32>
    %406 = arith.addf %402, %405 : vector<1x1x256xf32>
    %c224_i32 = arith.constant 224 : i32
    %407 = tpu.dynamic_rotate %406 by %c224_i32 dim 2 : vector<1x1x256xf32>, i32 -> vector<1x1x256xf32>
    %c12_42 = arith.constant 12 : index
    %c0_43 = arith.constant 0 : index
    %408 = vector.load %arg2[%c12_42, %c0_43] : memref<14x256xf32, #tpu.memory_space<vmem>>, vector<1x256xf32>
    %409 = vector.shape_cast %408 : vector<1x256xf32> to vector<1x1x256xf32>
    %410 = arith.mulf %407, %409 : vector<1x1x256xf32>
    %411 = arith.addf %351, %410 : vector<1x1x256xf32>
    %c42 = arith.constant 42 : index
    %412 = memref.load %arg1[%c42] : memref<98xf32, #tpu.memory_space<smem>>
    %413 = vector.broadcast %412 : f32 to vector<1x1x256xf32>
    %414 = arith.mulf %413, %12 : vector<1x1x256xf32>
    %c91 = arith.constant 91 : index
    %415 = memref.load %arg1[%c91] : memref<98xf32, #tpu.memory_space<smem>>
    %416 = vector.broadcast %415 : f32 to vector<1x1x256xf32>
    %417 = arith.mulf %416, %36 : vector<1x1x256xf32>
    %418 = arith.addf %414, %417 : vector<1x1x256xf32>
    %c43 = arith.constant 43 : index
    %419 = memref.load %arg1[%c43] : memref<98xf32, #tpu.memory_space<smem>>
    %420 = vector.broadcast %419 : f32 to vector<1x1x256xf32>
    %421 = arith.mulf %420, %16 : vector<1x1x256xf32>
    %422 = arith.addf %418, %421 : vector<1x1x256xf32>
    %c92 = arith.constant 92 : index
    %423 = memref.load %arg1[%c92] : memref<98xf32, #tpu.memory_space<smem>>
    %424 = vector.broadcast %423 : f32 to vector<1x1x256xf32>
    %425 = arith.mulf %424, %40 : vector<1x1x256xf32>
    %426 = arith.addf %422, %425 : vector<1x1x256xf32>
    %c44 = arith.constant 44 : index
    %427 = memref.load %arg1[%c44] : memref<98xf32, #tpu.memory_space<smem>>
    %428 = vector.broadcast %427 : f32 to vector<1x1x256xf32>
    %429 = arith.mulf %428, %20 : vector<1x1x256xf32>
    %430 = arith.addf %426, %429 : vector<1x1x256xf32>
    %c93 = arith.constant 93 : index
    %431 = memref.load %arg1[%c93] : memref<98xf32, #tpu.memory_space<smem>>
    %432 = vector.broadcast %431 : f32 to vector<1x1x256xf32>
    %433 = arith.mulf %432, %44 : vector<1x1x256xf32>
    %434 = arith.addf %430, %433 : vector<1x1x256xf32>
    %c45 = arith.constant 45 : index
    %435 = memref.load %arg1[%c45] : memref<98xf32, #tpu.memory_space<smem>>
    %436 = vector.broadcast %435 : f32 to vector<1x1x256xf32>
    %437 = arith.mulf %436, %8 : vector<1x1x256xf32>
    %438 = arith.addf %434, %437 : vector<1x1x256xf32>
    %c94 = arith.constant 94 : index
    %439 = memref.load %arg1[%c94] : memref<98xf32, #tpu.memory_space<smem>>
    %440 = vector.broadcast %439 : f32 to vector<1x1x256xf32>
    %441 = arith.mulf %440, %6 : vector<1x1x256xf32>
    %442 = arith.addf %438, %441 : vector<1x1x256xf32>
    %c46 = arith.constant 46 : index
    %443 = memref.load %arg1[%c46] : memref<98xf32, #tpu.memory_space<smem>>
    %444 = vector.broadcast %443 : f32 to vector<1x1x256xf32>
    %445 = arith.mulf %444, %24 : vector<1x1x256xf32>
    %446 = arith.addf %442, %445 : vector<1x1x256xf32>
    %c95 = arith.constant 95 : index
    %447 = memref.load %arg1[%c95] : memref<98xf32, #tpu.memory_space<smem>>
    %448 = vector.broadcast %447 : f32 to vector<1x1x256xf32>
    %449 = arith.mulf %448, %48 : vector<1x1x256xf32>
    %450 = arith.addf %446, %449 : vector<1x1x256xf32>
    %c47 = arith.constant 47 : index
    %451 = memref.load %arg1[%c47] : memref<98xf32, #tpu.memory_space<smem>>
    %452 = vector.broadcast %451 : f32 to vector<1x1x256xf32>
    %453 = arith.mulf %452, %28 : vector<1x1x256xf32>
    %454 = arith.addf %450, %453 : vector<1x1x256xf32>
    %c96 = arith.constant 96 : index
    %455 = memref.load %arg1[%c96] : memref<98xf32, #tpu.memory_space<smem>>
    %456 = vector.broadcast %455 : f32 to vector<1x1x256xf32>
    %457 = arith.mulf %456, %52 : vector<1x1x256xf32>
    %458 = arith.addf %454, %457 : vector<1x1x256xf32>
    %c48 = arith.constant 48 : index
    %459 = memref.load %arg1[%c48] : memref<98xf32, #tpu.memory_space<smem>>
    %460 = vector.broadcast %459 : f32 to vector<1x1x256xf32>
    %461 = arith.mulf %460, %32 : vector<1x1x256xf32>
    %462 = arith.addf %458, %461 : vector<1x1x256xf32>
    %c97 = arith.constant 97 : index
    %463 = memref.load %arg1[%c97] : memref<98xf32, #tpu.memory_space<smem>>
    %464 = vector.broadcast %463 : f32 to vector<1x1x256xf32>
    %465 = arith.mulf %464, %56 : vector<1x1x256xf32>
    %466 = arith.addf %462, %465 : vector<1x1x256xf32>
    %c208_i32 = arith.constant 208 : i32
    %467 = tpu.dynamic_rotate %466 by %c208_i32 dim 2 : vector<1x1x256xf32>, i32 -> vector<1x1x256xf32>
    %c13_44 = arith.constant 13 : index
    %c0_45 = arith.constant 0 : index
    %468 = vector.load %arg2[%c13_44, %c0_45] : memref<14x256xf32, #tpu.memory_space<vmem>>, vector<1x256xf32>
    %469 = vector.shape_cast %468 : vector<1x256xf32> to vector<1x1x256xf32>
    %470 = arith.mulf %467, %469 : vector<1x1x256xf32>
    %471 = arith.addf %411, %470 : vector<1x1x256xf32>
    %cst_46 = arith.constant 0.000000e+00 : f32
    %472 = vector.broadcast %cst_46 : f32 to vector<1x1x256xf32>
    %473 = arith.subf %472, %471 : vector<1x1x256xf32>
    %474 = math.exp %473 : vector<1x1x256xf32>
    %cst_47 = arith.constant 1.000000e+00 : f32
    %475 = vector.broadcast %cst_47 : f32 to vector<1x1x256xf32>
    %476 = arith.addf %475, %474 : vector<1x1x256xf32>
    %cst_48 = arith.constant 1.000000e+00 : f32
    %477 = vector.broadcast %cst_48 : f32 to vector<1x1x256xf32>
    %478 = arith.divf %477, %476 : vector<1x1x256xf32>
    %479 = vector.shape_cast %478 : vector<1x1x256xf32> to vector<1x1x256xf32>
    %480 = vector.broadcast %479 : vector<1x1x256xf32> to vector<1x4x256xf32>
    %c0_i32_49 = arith.constant 0 : i32
    %481 = tpu.assume_multiple %c0_i32_49, 4 : i32
    %c0_50 = arith.constant 0 : index
    %482 = arith.index_cast %481 : i32 to index
    %c0_51 = arith.constant 0 : index
    %483 = vector.load %arg3[%c0_50, %482, %c0_51] : memref<1x4x256xf32, #tpu.memory_space<vmem>>, vector<1x4x256xf32>
    %484 = arith.mulf %483, %480 : vector<1x4x256xf32>
    %c0_52 = arith.constant 0 : index
    %485 = arith.index_cast %481 : i32 to index
    %c0_53 = arith.constant 0 : index
    %486 = vector.load %arg4[%c0_52, %485, %c0_53] : memref<1x4x256xf32, #tpu.memory_space<vmem>>, vector<1x4x256xf32>
    tpu.vector_store %arg4[%c0_52, %485, %c0_53], %484 {strides = array<i32>} : memref<1x4x256xf32, #tpu.memory_space<vmem>>, vector<1x4x256xf32>,
    return
  }
  func.func @transform_0(%arg0: i32) -> i32 {
    %c0_i32 = arith.constant 0 : i32
    %c0_i32_0 = arith.constant 0 : i32
    return %c0_i32 : i32
  }
  func.func @transform_1(%arg0: i32) -> (i32, i32) {
    %c0_i32 = arith.constant 0 : i32
    %c0_i32_0 = arith.constant 0 : i32
    %c0_i32_1 = arith.constant 0 : i32
    return %c0_i32, %c0_i32_0 : i32, i32
  }
  func.func @transform_2(%arg0: i32) -> (i32, i32, i32) {
    %c0_i32 = arith.constant 0 : i32
    %c0_i32_0 = arith.constant 0 : i32
    %c0_i32_1 = arith.constant 0 : i32
    return %arg0, %c0_i32, %c0_i32_0 : i32, i32, i32
  }
  func.func @transform_3(%arg0: i32) -> (i32, i32, i32) {
    %c0_i32 = arith.constant 0 : i32
    %c0_i32_0 = arith.constant 0 : i32
    %c0_i32_1 = arith.constant 0 : i32
    return %arg0, %c0_i32, %c0_i32_0 : i32, i32, i32
  }
}

</mosaic_0001>

<llo_original>
// kernel: tpu_custom_call.1
$region0: #{tpu_custom_call.1}
  #allocation0 [shape = 'u32[]', space=smem, size = 0x4, offset = 0x4, fixed_abs, tag = 'smem constant byte address 0x4 - core index']
  #allocation1 [shape = 'u32[144,128]{1,0:T(1,128)}', space=vmem, size = 0x12000, scoped, tag = 'internal scratch']
  %s0 = inlined_call_operand.hbm [shape: f32[98], index: 0, kind: input, shape index: {}]
  %s1 = inlined_call_operand.hbm [shape: f32[14,256], index: 1, kind: input, shape index: {}]
  %s2 = inlined_call_operand.hbm [shape: f32[2,4,256], index: 2, kind: input, shape index: {}]
  %s3 = inlined_call_operand.hbm [shape: f32[2,4,256], index: 3, kind: output, shape index: {}]
  %s4 = sld [smem:[#allocation0]]
  $region57: #{tpu_custom_call.1} parent=0
    _
  %s6 = ssub.s32 1, %s4
  %s7 = scalar_select 0, %s6, %s4
  $region1: #{tpu_custom_call.1} parent=0
    #allocation2 [shape = 'u8[512]{0}', space=smem, size = 0x200, scoped, tag = 'input window, operand 0, single buffered']
    #allocation3 [shape = 's32[2]{0}', space=sflag, size = 0x8, scoped, tag = 'scoped memory for tpu_custom_call.1']
    #allocation4 [shape = 's32[2]{0}', space=sflag, size = 0x8, scoped, tag = 'scoped memory for tpu_custom_call.1']
    #allocation5 [shape = 's32[2]{0}', space=sflag, size = 0x8, scoped, tag = 'scoped memory for tpu_custom_call.1']
    #allocation6 [shape = 'u8[16384]{0}', space=vmem, size = 0x4000, scoped, tag = 'input window, operand 1, single buffered']
    #allocation7 [shape = 'u8[8192]{0}', space=vmem, size = 0x2000, scoped, tag = 'input window, operand 2']
    #allocation8 [shape = 's32[2]{0}', space=sflag, size = 0x8, scoped, tag = 'scoped memory for tpu_custom_call.1']
    #allocation9 [shape = 'u8[8192]{0}', space=vmem, size = 0x2000, scoped, tag = 'output window, operand 0']
    %8 = vsyncpa [#allocation5], 0
    %9 = vsyncpa [#allocation3], 0
    %10 = vsyncpa [#allocation8], 0
    %s11 = scalar_lea.sflag [#allocation8], 1
    %12 = vsyncpa %s11, 0
    %13 = vsyncpa [#allocation4], 0
    %s14 = scalar_lea.sflag [#allocation4], 1
    %15 = vsyncpa %s14, 0
    loop: start=0, step=1, limit=4
    $region2: #{tpu_custom_call.1} parent=1 // loop_pre_header
      _
    $region3: #{tpu_custom_call.1} parent=1 // loop_header
      %s17 = sphi 0, %s21
      %p18 = scmp.ge.s32.totalorder %s17, 4
      %s25 = sphi 0, %s25
      %s27 = sphi 0, %s25
      %s28 = sphi 0, %s27
      %s42 = sphi 0, %s28
      %s46 = sphi 0, %s46
      %s48 = sphi 0, %s46
      %s49 = sphi 0, %s48
      %s63 = sphi 0, %s49
      %s69 = sphi 0, %s71
      %s72 = sphi 0, %s69
      %s73 = sphi 0, %s72
      %s89 = sphi 0, %s73
      %s95 = sphi 0, %s97
      %s98 = sphi 0, %s95
      %s99 = sphi 0, %s98
      %s115 = sphi 0, %s99
    $region4: #{tpu_custom_call.1} parent=1 // loop_header_branch
      %20 = sbr.rel (%p18) target = $region8
    $region5: #{tpu_custom_call.1} parent=1 // loop_body
      %s22 = ssub.s32 %s17, 1
      %s23 = ssub.s32 %s17, 2
      %s24 = sadd.s32 %s17, 1
      %s26 = sadd.s32 %s25, 1
      %p29 = scmp.eq.s32.totalorder %s17, 1
      %p30 = scmp.ne.s32.totalorder %s25, %s27
      %p31 = scmp.eq.s32.totalorder %s17, 0
      %p32 = por %p30, %p31
      %p33 = scmp.ne.s32.totalorder %s25, %s27
      %p34 = scmp.eq.s32.totalorder %s22, 1
      %p35 = por %p33, %p34
      %p36 = scmp.ne.s32.totalorder %s27, %s28
      %p37 = scmp.eq.s32.totalorder %s22, 0
      %p38 = por %p36, %p37
      %p39 = scmp.ne.s32.totalorder %s27, %s28
      %p40 = scmp.eq.s32.totalorder %s23, 1
      %p41 = por %p39, %p40
      %p43 = scmp.ne.s32.totalorder %s28, %s42
      %p44 = scmp.eq.s32.totalorder %s23, 0
      %p45 = por %p43, %p44
      %s47 = sadd.s32 %s46, 1
      %p50 = scmp.eq.s32.totalorder %s17, 1
      %p51 = scmp.ne.s32.totalorder %s46, %s48
      %p52 = scmp.eq.s32.totalorder %s17, 0
      %p53 = por %p51, %p52
      %p54 = scmp.ne.s32.totalorder %s46, %s48
      %p55 = scmp.eq.s32.totalorder %s22, 1
      %p56 = por %p54, %p55
      %p57 = scmp.ne.s32.totalorder %s48, %s49
      %p58 = scmp.eq.s32.totalorder %s22, 0
      %p59 = por %p57, %p58
      %p60 = scmp.ne.s32.totalorder %s48, %s49
      %p61 = scmp.eq.s32.totalorder %s23, 1
      %p62 = por %p60, %p61
      %p64 = scmp.ne.s32.totalorder %s49, %s63
      %p65 = scmp.eq.s32.totalorder %s23, 0
      %p66 = por %p64, %p65
      %s67 = ssub.s32 %s17, %s24
      %p68 = scmp.eq.s32.totalorder %s67, 0
      %s70 = sadd.s32 %s69, 1
      %s71 = scalar_select %p68, %s69, %s70
      %p74 = pneg %p68
      %p75 = scmp.eq.s32.totalorder %s17, 1
      %p76 = por %p74, %p75
      %p77 = scmp.ne.s32.totalorder %s69, %s72
      %p78 = scmp.eq.s32.totalorder %s17, 0
      %p79 = por %p77, %p78
      %p80 = scmp.ne.s32.totalorder %s69, %s72
      %p81 = scmp.eq.s32.totalorder %s22, 1
      %p82 = por %p80, %p81
      %p83 = scmp.ne.s32.totalorder %s72, %s73
      %p84 = scmp.eq.s32.totalorder %s22, 0
      %p85 = por %p83, %p84
      %p86 = scmp.ne.s32.totalorder %s72, %s73
      %p87 = scmp.eq.s32.totalorder %s23, 1
      %p88 = por %p86, %p87
      %p90 = scmp.ne.s32.totalorder %s73, %s89
      %p91 = scmp.eq.s32.totalorder %s23, 0
      %p92 = por %p90, %p91
      %s93 = ssub.s32 %s17, %s24
      %p94 = scmp.eq.s32.totalorder %s93, 0
      %s96 = sadd.s32 %s95, 1
      %s97 = scalar_select %p94, %s95, %s96
      %p100 = pneg %p94
      %p101 = scmp.eq.s32.totalorder %s17, 1
      %p102 = por %p100, %p101
      %p103 = scmp.ne.s32.totalorder %s95, %s98
      %p104 = scmp.eq.s32.totalorder %s17, 0
      %p105 = por %p103, %p104
      %p106 = scmp.ne.s32.totalorder %s95, %s98
      %p107 = scmp.eq.s32.totalorder %s22, 1
      %p108 = por %p106, %p107
      %p109 = scmp.ne.s32.totalorder %s98, %s99
      %p110 = scmp.eq.s32.totalorder %s22, 0
      %p111 = por %p109, %p110
      %p112 = scmp.ne.s32.totalorder %s98, %s99
      %p113 = scmp.eq.s32.totalorder %s23, 1
      %p114 = por %p112, %p113
      %p116 = scmp.ne.s32.totalorder %s99, %s115
      %p117 = scmp.eq.s32.totalorder %s23, 0
      %p118 = por %p116, %p117
      %p119 = scmp.le.s32.totalorder 1, %s17
      %p120 = scmp.lt.s32.totalorder %s17, 3
      %p121 = pnand %p119, %p120
      %p122 = pneg %p121
      // Predicated region
      $region9: #{tpu_custom_call.1} parent=5 // pred_check
        _
      $region10: #{tpu_custom_call.1} parent=5 // pred_check_branch
        %124 = sbr.rel (%p121) target = $region12
      $region11: #{tpu_custom_call.1} parent=5 // pred_region
        %s125 = ssub.s32 %s17, 1
        // Predicated region
        $region13: #{tpu_custom_call.1} parent=11 // pred_check
          %p126 = pneg %p38
        $region14: #{tpu_custom_call.1} parent=11 // pred_check_branch
          %128 = sbr.rel (%p126) target = $region16
        $region15: #{tpu_custom_call.1} parent=11 // pred_region
          %s130 = ssub.s32 16, 16
          %131 = vsyncadd [#allocation5], %s130
          %134 = dma.hbm_to_smem %s0, 16, [#allocation2], [#allocation5]
        $region16: #{tpu_custom_call.1} parent=11 // pred_fallthru
          _
        // Predicated region
        $region17: #{tpu_custom_call.1} parent=11 // pred_check
          %p135 = pneg %p59
        $region18: #{tpu_custom_call.1} parent=11 // pred_check_branch
          %137 = sbr.rel (%p135) target = $region20
        $region19: #{tpu_custom_call.1} parent=11 // pred_region
          %s139 = ssub.s32 512, 512
          %140 = vsyncadd [#allocation3], %s139
          %s141 = sshll.u32 [#allocation6], 4
          %s142 = int_to_ptr.vmem [resolvable:$true] %s141
          %147 = dma.hbm_to_vmem [thread:$0]  %s1, 512, %s142, [#allocation3], 256, 256, 16
        $region20: #{tpu_custom_call.1} parent=11 // pred_fallthru
          _
      $region12: #{tpu_custom_call.1} parent=5 // pred_fallthru
        _
      %p148 = scmp.lt.s32.totalorder %s17, 2
      // Predicated region
      $region21: #{tpu_custom_call.1} parent=5 // pred_check
        %p149 = pneg %p148
      $region22: #{tpu_custom_call.1} parent=5 // pred_check_branch
        %151 = sbr.rel (%p149) target = $region24
      $region23: #{tpu_custom_call.1} parent=5 // pred_region
        // Predicated region
        $region25: #{tpu_custom_call.1} parent=23 // pred_check
          %p152 = pneg %p79
        $region26: #{tpu_custom_call.1} parent=23 // pred_check_branch
          %154 = sbr.rel (%p152) target = $region28
        $region27: #{tpu_custom_call.1} parent=23 // pred_region
          %s155 = sand.u32 %s69, 1
          %s156 = scalar_lea.sflag [#allocation8], %s155
          %s157 = sand.u32 %s69, 1
          %s158 = smul.addr %s157, 8
          %s159 = scalar_lea.vmem [#allocation7], %s158
          %s161 = ssub.s32 128, 128
          %162 = vsyncadd %s156, %s161
          %s163 = smul.addr %s17, 2
          %s164 = smul.addr %s163, 64
          %s165 = scalar_lea.hbm %s2, %s164
          %s167 = sshll.u32 %s159, 4
          %s168 = int_to_ptr.vmem [resolvable:$true] %s167
          %170 = dma.hbm_to_vmem [thread:$0]  %s165, 128, %s168, %s156
        $region28: #{tpu_custom_call.1} parent=23 // pred_fallthru
          _
      $region24: #{tpu_custom_call.1} parent=5 // pred_fallthru
        _
      %p171 = scmp.le.s32.totalorder 1, %s17
      %p172 = scmp.lt.s32.totalorder %s17, 3
      %p173 = pnand %p171, %p172
      %p174 = pneg %p173
      // Predicated region
      $region29: #{tpu_custom_call.1} parent=5 // pred_check
        _
      $region30: #{tpu_custom_call.1} parent=5 // pred_check_branch
        %176 = sbr.rel (%p173) target = $region32
      $region31: #{tpu_custom_call.1} parent=5 // pred_region
        %s177 = ssub.s32 %s17, 1
        // Predicated region
        $region33: #{tpu_custom_call.1} parent=31 // pred_check
          %p178 = pneg %p38
        $region34: #{tpu_custom_call.1} parent=31 // pred_check_branch
          %180 = sbr.rel (%p178) target = $region36
        $region35: #{tpu_custom_call.1} parent=31 // pred_region
          %181 = dma.done [#allocation5], 16
        $region36: #{tpu_custom_call.1} parent=31 // pred_fallthru
          _
        // Predicated region
        $region37: #{tpu_custom_call.1} parent=31 // pred_check
          %p182 = pneg %p59
        $region38: #{tpu_custom_call.1} parent=31 // pred_check_branch
          %184 = sbr.rel (%p182) target = $region40
        $region39: #{tpu_custom_call.1} parent=31 // pred_region
          %185 = dma.done [#allocation3], 512
        $region40: #{tpu_custom_call.1} parent=31 // pred_fallthru
          _
        %s186 = sand.u32 %s72, 1
        %s187 = scalar_lea.sflag [#allocation8], %s186
        %s188 = sand.u32 %s72, 1
        %s189 = smul.addr %s188, 8
        %s190 = scalar_lea.vmem [#allocation7], %s189
        // Predicated region
        $region41: #{tpu_custom_call.1} parent=31 // pred_check
          %p191 = pneg %p85
        $region42: #{tpu_custom_call.1} parent=31 // pred_check_branch
          %193 = sbr.rel (%p191) target = $region44
        $region43: #{tpu_custom_call.1} parent=31 // pred_region
          %194 = dma.done %s187, 128
        $region44: #{tpu_custom_call.1} parent=31 // pred_fallthru
          _
        %195 = sfence
        %p196 = pneg %p38
        %p197 = pneg %p35
        %p198 = pneg %p59
        %p199 = pneg %p56
        %s200 = sand.u32 %s72, 1
        %s201 = scalar_lea.sflag [#allocation8], %s200
        %s202 = sand.u32 %s72, 1
        %s203 = smul.addr %s202, 8
        %s204 = scalar_lea.vmem [#allocation7], %s203
        %p205 = pneg %p85
        %p206 = pneg %p82
        %p207 = pneg %p111
        %p208 = pneg %p108
        %s209 = sand.u32 %s98, 1
        %s210 = scalar_lea.sflag [#allocation4], %s209
        %s211 = sand.u32 %s98, 1
        %s212 = smul.addr %s211, 8
        %s213 = scalar_lea.vmem [#allocation9], %s212
        %s214 = smul.u32 0, 2
        %s215 = smul.addr %s214, 4
        %s216 = scalar_lea.vmem %s190, %s215 [#allocation7]
        %v217 = vld [vmem:[%s216] sm:$0xff]
        %v219 = vcombine.high %v217, %v217
        %vm221 = vcmask 1043456
        %v222 = vsel %vm221, %v217, 0.0
        %v223 = vrot.slane %v222, 4
        %v224 = vadd.f32 %v222, %v223
        %v225 = vrot.slane %v224, 2
        %v226 = vadd.f32 %v224, %v225
        %v227 = vrot.slane %v226, 1
        %v228 = vadd.f32 %v226, %v227
        %v229 = vsel %vm221, %v219, 0.0
        %v230 = vrot.slane %v229, 4
        %v231 = vadd.f32 %v229, %v230
        %v232 = vrot.slane %v231, 2
        %v233 = vadd.f32 %v231, %v232
        %v234 = vrot.slane %v233, 1
        %v235 = vadd.f32 %v233, %v234
        %v236 = vsel %vm221, %v217, -inf
        %v237 = vrot.slane %v236, 4
        %v238 = vmax.f32 %v236, %v237
        %v239 = vrot.slane %v238, 2
        %v240 = vmax.f32 %v238, %v239
        %v241 = vrot.slane %v240, 1
        %v242 = vmax.f32 %v240, %v241
        %v243 = vsel %vm221, %v219, -inf
        %v244 = vrot.slane %v243, 4
        %v245 = vmax.f32 %v243, %v244
        %v246 = vrot.slane %v245, 2
        %v247 = vmax.f32 %v245, %v246
        %v248 = vrot.slane %v247, 1
        %v249 = vmax.f32 %v247, %v248
        %v250 = vmul.f32 %v228, 0.25
        %v251 = vmul.f32 %v235, 0.25
        %252 = vrot.lane.b32.xlu0 %v250, 3
        %v253 = vpop.permute.xlu0 %252
        %254 = vrot.lane.b32.xlu0 %v251, 3
        %v255 = vpop.permute.xlu0 %254
        %v256 = vlaneseq
        %v257 = vand.u32 %v256, 127
        %vm258 = vcmp.lt.s32.totalorder %v257, 3
        %v259 = vsel %vm258, %v253, %v255
        %v260 = vsel %vm258, %v255, %v253
        %v261 = vld [vmem:[#allocation6] ss:$8 sm:$0x3]
        %v263 = vlaneseq
        %v264 = vshrl.u32 %v263, 7
        %v265 = vsub.s32 0, %v264
        %v266 = vrot.slane %v261, %v265
        %v267 = vlaneseq
        %v268 = vshrl.u32 %v267, 7
        %v269 = vsub.s32 1, %v268
        %v270 = vrot.slane %v261, %v269
        %v273 = vmul.f32 %v260, %v266
        %v274 = vmul.f32 %v259, %v270
        %275 = vrot.lane.b32.xlu0 %v250, 2
        %v276 = vpop.permute.xlu0 %275
        %277 = vrot.lane.b32.xlu0 %v251, 2
        %v278 = vpop.permute.xlu0 %277
        %vm279 = vcmp.lt.s32.totalorder %v257, 2
        %v280 = vsel %vm279, %v276, %v278
        %v281 = vsel %vm279, %v278, %v276
        %s282 = scalar_lea.vmem [#allocation6], 1
        %v283 = vld [vmem:[%s282] ss:$8 sm:$0x3]
        %v285 = vlaneseq
        %v286 = vshrl.u32 %v285, 7
        %v287 = vsub.s32 0, %v286
        %v288 = vrot.slane %v283, %v287
        %v289 = vlaneseq
        %v290 = vshrl.u32 %v289, 7
        %v291 = vsub.s32 1, %v290
        %v292 = vrot.slane %v283, %v291
        %v295 = vmul.f32 %v281, %v288
        %v296 = vmul.f32 %v280, %v292
        %297 = vrot.lane.b32.xlu0 %v250, 1
        %v298 = vpop.permute.xlu0 %297
        %299 = vrot.lane.b32.xlu0 %v251, 1
        %v300 = vpop.permute.xlu0 %299
        %vm301 = vcmp.lt.s32.totalorder %v257, 1
        %v302 = vsel %vm301, %v298, %v300
        %v303 = vsel %vm301, %v300, %v298
        %s304 = scalar_lea.vmem [#allocation6], 2
        %v305 = vld [vmem:[%s304] ss:$8 sm:$0x3]
        %v307 = vlaneseq
        %v308 = vshrl.u32 %v307, 7
        %v309 = vsub.s32 0, %v308
        %v310 = vrot.slane %v305, %v309
        %v311 = vlaneseq
        %v312 = vshrl.u32 %v311, 7
        %v313 = vsub.s32 1, %v312
        %v314 = vrot.slane %v305, %v313
        %v317 = vmul.f32 %v303, %v310
        %v318 = vmul.f32 %v302, %v314
        %319 = vrot.lane.b32.xlu0 %v250, 127
        %v320 = vpop.permute.xlu0 %319
        %321 = vrot.lane.b32.xlu0 %v251, 127
        %v322 = vpop.permute.xlu0 %321
        %vm323 = vcmp.lt.s32.totalorder %v257, 127
        %v324 = vsel %vm323, %v320, %v322
        %v325 = vsel %vm323, %v322, %v320
        %s326 = scalar_lea.vmem [#allocation6], 4
        %v327 = vld [vmem:[%s326] ss:$8 sm:$0x3]
        %v329 = vlaneseq
        %v330 = vshrl.u32 %v329, 7
        %v331 = vsub.s32 0, %v330
        %v332 = vrot.slane %v327, %v331
        %v333 = vlaneseq
        %v334 = vshrl.u32 %v333, 7
        %v335 = vsub.s32 1, %v334
        %v336 = vrot.slane %v327, %v335
        %v339 = vmul.f32 %v324, %v332
        %v340 = vmul.f32 %v325, %v336
        %341 = vrot.lane.b32.xlu0 %v250, 126
        %v342 = vpop.permute.xlu0 %341
        %343 = vrot.lane.b32.xlu0 %v251, 126
        %v344 = vpop.permute.xlu0 %343
        %vm345 = vcmp.lt.s32.totalorder %v257, 126
        %v346 = vsel %vm345, %v342, %v344
        %v347 = vsel %vm345, %v344, %v342
        %s348 = scalar_lea.vmem [#allocation6], 5
        %v349 = vld [vmem:[%s348] ss:$8 sm:$0x3]
        %v351 = vlaneseq
        %v352 = vshrl.u32 %v351, 7
        %v353 = vsub.s32 0, %v352
        %v354 = vrot.slane %v349, %v353
        %v355 = vlaneseq
        %v356 = vshrl.u32 %v355, 7
        %v357 = vsub.s32 1, %v356
        %v358 = vrot.slane %v349, %v357
        %v361 = vmul.f32 %v346, %v354
        %v362 = vmul.f32 %v347, %v358
        %363 = vrot.lane.b32.xlu0 %v250, 125
        %v364 = vpop.permute.xlu0 %363
        %365 = vrot.lane.b32.xlu0 %v251, 125
        %v366 = vpop.permute.xlu0 %365
        %vm367 = vcmp.lt.s32.totalorder %v257, 125
        %v368 = vsel %vm367, %v364, %v366
        %v369 = vsel %vm367, %v366, %v364
        %s370 = scalar_lea.vmem [#allocation6], 6
        %v371 = vld [vmem:[%s370] ss:$8 sm:$0x3]
        %v373 = vlaneseq
        %v374 = vshrl.u32 %v373, 7
        %v375 = vsub.s32 0, %v374
        %v376 = vrot.slane %v371, %v375
        %v377 = vlaneseq
        %v378 = vshrl.u32 %v377, 7
        %v379 = vsub.s32 1, %v378
        %v380 = vrot.slane %v371, %v379
        %v383 = vmul.f32 %v368, %v376
        %v384 = vmul.f32 %v369, %v380
        %385 = vrot.lane.b32.xlu0 %v242, 3
        %v386 = vpop.permute.xlu0 %385
        %387 = vrot.lane.b32.xlu0 %v249, 3
        %v388 = vpop.permute.xlu0 %387
        %v389 = vsel %vm258, %v386, %v388
        %v390 = vsel %vm258, %v388, %v386
        %v391 = vmul.f32 %v390, %v266
        %v392 = vmul.f32 %v389, %v270
        %393 = vrot.lane.b32.xlu0 %v242, 2
        %v394 = vpop.permute.xlu0 %393
        %395 = vrot.lane.b32.xlu0 %v249, 2
        %v396 = vpop.permute.xlu0 %395
        %v397 = vsel %vm279, %v394, %v396
        %v398 = vsel %vm279, %v396, %v394
        %v399 = vmul.f32 %v398, %v288
        %v400 = vmul.f32 %v397, %v292
        %401 = vrot.lane.b32.xlu0 %v242, 1
        %v402 = vpop.permute.xlu0 %401
        %403 = vrot.lane.b32.xlu0 %v249, 1
        %v404 = vpop.permute.xlu0 %403
        %v405 = vsel %vm301, %v402, %v404
        %v406 = vsel %vm301, %v404, %v402
        %v407 = vmul.f32 %v406, %v310
        %v408 = vmul.f32 %v405, %v314
        %409 = vrot.lane.b32.xlu0 %v242, 127
        %v410 = vpop.permute.xlu0 %409
        %411 = vrot.lane.b32.xlu0 %v249, 127
        %v412 = vpop.permute.xlu0 %411
        %v413 = vsel %vm323, %v410, %v412
        %v414 = vsel %vm323, %v412, %v410
        %v415 = vmul.f32 %v413, %v332
        %v416 = vmul.f32 %v414, %v336
        %417 = vrot.lane.b32.xlu0 %v242, 126
        %v418 = vpop.permute.xlu0 %417
        %419 = vrot.lane.b32.xlu0 %v249, 126
        %v420 = vpop.permute.xlu0 %419
        %v421 = vsel %vm345, %v418, %v420
        %v422 = vsel %vm345, %v420, %v418
        %v423 = vmul.f32 %v421, %v354
        %v424 = vmul.f32 %v422, %v358
        %425 = vrot.lane.b32.xlu0 %v242, 125
        %v426 = vpop.permute.xlu0 %425
        %427 = vrot.lane.b32.xlu0 %v249, 125
        %v428 = vpop.permute.xlu0 %427
        %v429 = vsel %vm367, %v426, %v428
        %v430 = vsel %vm367, %v428, %v426
        %v431 = vmul.f32 %v429, %v376
        %v432 = vmul.f32 %v430, %v380
        %s433 = sld [smem:[#allocation2]]
        %v434 = vstv %s433
        %v435 = vmul.f32 %v434, %v273
        %v436 = vmul.f32 %v434, %v274
        %s437 = sld [smem:[#allocation2 + $0x31]]
        %v438 = vstv %s437
        %v439 = vmul.f32 %v438, %v391
        %v440 = vmul.f32 %v438, %v392
        %v441 = vadd.f32 %v435, %v439
        %v442 = vadd.f32 %v436, %v440
        %s443 = sld [smem:[#allocation2 + $0x1]]
        %v444 = vstv %s443
        %v445 = vmul.f32 %v444, %v295
        %v446 = vmul.f32 %v444, %v296
        %v447 = vadd.f32 %v441, %v445
        %v448 = vadd.f32 %v442, %v446
        %s449 = sld [smem:[#allocation2 + $0x32]]
        %v450 = vstv %s449
        %v451 = vmul.f32 %v450, %v399
        %v452 = vmul.f32 %v450, %v400
        %v453 = vadd.f32 %v447, %v451
        %v454 = vadd.f32 %v448, %v452
        %s455 = sld [smem:[#allocation2 + $0x2]]
        %v456 = vstv %s455
        %v457 = vmul.f32 %v456, %v317
        %v458 = vmul.f32 %v456, %v318
        %v459 = vadd.f32 %v453, %v457
        %v460 = vadd.f32 %v454, %v458
        %s461 = sld [smem:[#allocation2 + $0x33]]
        %v462 = vstv %s461
        %v463 = vmul.f32 %v462, %v407
        %v464 = vmul.f32 %v462, %v408
        %v465 = vadd.f32 %v459, %v463
        %v466 = vadd.f32 %v460, %v464
        %s467 = sld [smem:[#allocation2 + $0x3]]
        %v468 = vstv %s467
        %v469 = vmul.f32 %v468, %v250
        %v470 = vmul.f32 %v468, %v251
        %v471 = vadd.f32 %v465, %v469
        %v472 = vadd.f32 %v466, %v470
        %s473 = sld [smem:[#allocation2 + $0x34]]
        %v474 = vstv %s473
        %v475 = vmul.f32 %v474, %v242
        %v476 = vmul.f32 %v474, %v249
        %v477 = vadd.f32 %v471, %v475
        %v478 = vadd.f32 %v472, %v476
        %s479 = sld [smem:[#allocation2 + $0x4]]
        %v480 = vstv %s479
        %v481 = vmul.f32 %v480, %v339
        %v482 = vmul.f32 %v480, %v340
        %v483 = vadd.f32 %v477, %v481
        %v484 = vadd.f32 %v478, %v482
        %s485 = sld [smem:[#allocation2 + $0x35]]
        %v486 = vstv %s485
        %v487 = vmul.f32 %v486, %v415
        %v488 = vmul.f32 %v486, %v416
        %v489 = vadd.f32 %v483, %v487
        %v490 = vadd.f32 %v484, %v488
        %s491 = sld [smem:[#allocation2 + $0x5]]
        %v492 = vstv %s491
        %v493 = vmul.f32 %v492, %v361
        %v494 = vmul.f32 %v492, %v362
        %v495 = vadd.f32 %v489, %v493
        %v496 = vadd.f32 %v490, %v494
        %s497 = sld [smem:[#allocation2 + $0x36]]
        %v498 = vstv %s497
        %v499 = vmul.f32 %v498, %v423
        %v500 = vmul.f32 %v498, %v424
        %v501 = vadd.f32 %v495, %v499
        %v502 = vadd.f32 %v496, %v500
        %s503 = sld [smem:[#allocation2 + $0x6]]
        %v504 = vstv %s503
        %v505 = vmul.f32 %v504, %v383
        %v506 = vmul.f32 %v504, %v384
        %v507 = vadd.f32 %v501, %v505
        %v508 = vadd.f32 %v502, %v506
        %s509 = sld [smem:[#allocation2 + $0x37]]
        %v510 = vstv %s509
        %v511 = vmul.f32 %v510, %v431
        %v512 = vmul.f32 %v510, %v432
        %v513 = vadd.f32 %v507, %v511
        %v514 = vadd.f32 %v508, %v512
        %515 = vrot.lane.b32.xlu0 %v513, 48
        %v516 = vpop.permute.xlu0 %515
        %517 = vrot.lane.b32.xlu0 %v514, 48
        %v518 = vpop.permute.xlu0 %517
        %vm519 = vcmp.lt.s32.totalorder %v257, 48
        %v520 = vsel %vm519, %v516, %v518
        %v521 = vsel %vm519, %v518, %v516
        %s522 = scalar_lea.vmem [#allocation6], 7
        %v523 = vld [vmem:[%s522] ss:$8 sm:$0x3]
        %v525 = vlaneseq
        %v526 = vshrl.u32 %v525, 7
        %v527 = vsub.s32 0, %v526
        %v528 = vrot.slane %v523, %v527
        %v529 = vlaneseq
        %v530 = vshrl.u32 %v529, 7
        %v531 = vsub.s32 1, %v530
        %v532 = vrot.slane %v523, %v531
        %v535 = vmul.f32 %v521, %v528
        %v536 = vmul.f32 %v520, %v532
        %s537 = sld [smem:[#allocation2 + $0x7]]
        %v538 = vstv %s537
        %v539 = vmul.f32 %v538, %v273
        %v540 = vmul.f32 %v538, %v274
        %s541 = sld [smem:[#allocation2 + $0x38]]
        %v542 = vstv %s541
        %v543 = vmul.f32 %v542, %v391
        %v544 = vmul.f32 %v542, %v392
        %v545 = vadd.f32 %v539, %v543
        %v546 = vadd.f32 %v540, %v544
        %s547 = sld [smem:[#allocation2 + $0x8]]
        %v548 = vstv %s547
        %v549 = vmul.f32 %v548, %v295
        %v550 = vmul.f32 %v548, %v296
        %v551 = vadd.f32 %v545, %v549
        %v552 = vadd.f32 %v546, %v550
        %s553 = sld [smem:[#allocation2 + $0x39]]
        %v554 = vstv %s553
        %v555 = vmul.f32 %v554, %v399
        %v556 = vmul.f32 %v554, %v400
        %v557 = vadd.f32 %v551, %v555
        %v558 = vadd.f32 %v552, %v556
        %s559 = sld [smem:[#allocation2 + $0x9]]
        %v560 = vstv %s559
        %v561 = vmul.f32 %v560, %v317
        %v562 = vmul.f32 %v560, %v318
        %v563 = vadd.f32 %v557, %v561
        %v564 = vadd.f32 %v558, %v562
        %s565 = sld [smem:[#allocation2 + $0x3a]]
        %v566 = vstv %s565
        %v567 = vmul.f32 %v566, %v407
        %v568 = vmul.f32 %v566, %v408
        %v569 = vadd.f32 %v563, %v567
        %v570 = vadd.f32 %v564, %v568
        %s571 = sld [smem:[#allocation2 + $0xa]]
        %v572 = vstv %s571
        %v573 = vmul.f32 %v572, %v250
        %v574 = vmul.f32 %v572, %v251
        %v575 = vadd.f32 %v569, %v573
        %v576 = vadd.f32 %v570, %v574
        %s577 = sld [smem:[#allocation2 + $0x3b]]
        %v578 = vstv %s577
        %v579 = vmul.f32 %v578, %v242
        %v580 = vmul.f32 %v578, %v249
        %v581 = vadd.f32 %v575, %v579
        %v582 = vadd.f32 %v576, %v580
        %s583 = sld [smem:[#allocation2 + $0xb]]
        %v584 = vstv %s583
        %v585 = vmul.f32 %v584, %v339
        %v586 = vmul.f32 %v584, %v340
        %v587 = vadd.f32 %v581, %v585
        %v588 = vadd.f32 %v582, %v586
        %s589 = sld [smem:[#allocation2 + $0x3c]]
        %v590 = vstv %s589
        %v591 = vmul.f32 %v590, %v415
        %v592 = vmul.f32 %v590, %v416
        %v593 = vadd.f32 %v587, %v591
        %v594 = vadd.f32 %v588, %v592
        %s595 = sld [smem:[#allocation2 + $0xc]]
        %v596 = vstv %s595
        %v597 = vmul.f32 %v596, %v361
        %v598 = vmul.f32 %v596, %v362
        %v599 = vadd.f32 %v593, %v597
        %v600 = vadd.f32 %v594, %v598
        %s601 = sld [smem:[#allocation2 + $0x3d]]
        %v602 = vstv %s601
        %v603 = vmul.f32 %v602, %v423
        %v604 = vmul.f32 %v602, %v424
        %v605 = vadd.f32 %v599, %v603
        %v606 = vadd.f32 %v600, %v604
        %s607 = sld [smem:[#allocation2 + $0xd]]
        %v608 = vstv %s607
        %v609 = vmul.f32 %v608, %v383
        %v610 = vmul.f32 %v608, %v384
        %v611 = vadd.f32 %v605, %v609
        %v612 = vadd.f32 %v606, %v610
        %s613 = sld [smem:[#allocation2 + $0x3e]]
        %v614 = vstv %s613
        %v615 = vmul.f32 %v614, %v431
        %v616 = vmul.f32 %v614, %v432
        %v617 = vadd.f32 %v611, %v615
        %v618 = vadd.f32 %v612, %v616
        %619 = vrot.lane.b32.xlu0 %v617, 32
        %v620 = vpop.permute.xlu0 %619
        %621 = vrot.lane.b32.xlu0 %v618, 32
        %v622 = vpop.permute.xlu0 %621
        %vm623 = vcmp.lt.s32.totalorder %v257, 32
        %v624 = vsel %vm623, %v620, %v622
        %v625 = vsel %vm623, %v622, %v620
        %s626 = scalar_lea.vmem [#allocation6], 16
        %v627 = vld [vmem:[%s626] ss:$8 sm:$0x3]
        %v629 = vlaneseq
        %v630 = vshrl.u32 %v629, 7
        %v631 = vsub.s32 0, %v630
        %v632 = vrot.slane %v627, %v631
        %v633 = vlaneseq
        %v634 = vshrl.u32 %v633, 7
        %v635 = vsub.s32 1, %v634
        %v636 = vrot.slane %v627, %v635
        %v639 = vmul.f32 %v625, %v632
        %v640 = vmul.f32 %v624, %v636
        %v641 = vadd.f32 %v535, %v639
        %v642 = vadd.f32 %v536, %v640
        %s643 = sld [smem:[#allocation2 + $0xe]]
        %v644 = vstv %s643
        %v645 = vmul.f32 %v644, %v273
        %v646 = vmul.f32 %v644, %v274
        %s647 = sld [smem:[#allocation2 + $0x3f]]
        %v648 = vstv %s647
        %v649 = vmul.f32 %v648, %v391
        %v650 = vmul.f32 %v648, %v392
        %v651 = vadd.f32 %v645, %v649
        %v652 = vadd.f32 %v646, %v650
        %s653 = sld [smem:[#allocation2 + $0xf]]
        %v654 = vstv %s653
        %v655 = vmul.f32 %v654, %v295
        %v656 = vmul.f32 %v654, %v296
        %v657 = vadd.f32 %v651, %v655
        %v658 = vadd.f32 %v652, %v656
        %s659 = sld [smem:[#allocation2 + $0x40]]
        %v660 = vstv %s659
        %v661 = vmul.f32 %v660, %v399
        %v662 = vmul.f32 %v660, %v400
        %v663 = vadd.f32 %v657, %v661
        %v664 = vadd.f32 %v658, %v662
        %s665 = sld [smem:[#allocation2 + $0x10]]
        %v666 = vstv %s665
        %v667 = vmul.f32 %v666, %v317
        %v668 = vmul.f32 %v666, %v318
        %v669 = vadd.f32 %v663, %v667
        %v670 = vadd.f32 %v664, %v668
        %s671 = sld [smem:[#allocation2 + $0x41]]
        %v672 = vstv %s671
        %v673 = vmul.f32 %v672, %v407
        %v674 = vmul.f32 %v672, %v408
        %v675 = vadd.f32 %v669, %v673
        %v676 = vadd.f32 %v670, %v674
        %s677 = sld [smem:[#allocation2 + $0x11]]
        %v678 = vstv %s677
        %v679 = vmul.f32 %v678, %v250
        %v680 = vmul.f32 %v678, %v251
        %v681 = vadd.f32 %v675, %v679
        %v682 = vadd.f32 %v676, %v680
        %s683 = sld [smem:[#allocation2 + $0x42]]
        %v684 = vstv %s683
        %v685 = vmul.f32 %v684, %v242
        %v686 = vmul.f32 %v684, %v249
        %v687 = vadd.f32 %v681, %v685
        %v688 = vadd.f32 %v682, %v686
        %s689 = sld [smem:[#allocation2 + $0x12]]
        %v690 = vstv %s689
        %v691 = vmul.f32 %v690, %v339
        %v692 = vmul.f32 %v690, %v340
        %v693 = vadd.f32 %v687, %v691
        %v694 = vadd.f32 %v688, %v692
        %s695 = sld [smem:[#allocation2 + $0x43]]
        %v696 = vstv %s695
        %v697 = vmul.f32 %v696, %v415
        %v698 = vmul.f32 %v696, %v416
        %v699 = vadd.f32 %v693, %v697
        %v700 = vadd.f32 %v694, %v698
        %s701 = sld [smem:[#allocation2 + $0x13]]
        %v702 = vstv %s701
        %v703 = vmul.f32 %v702, %v361
        %v704 = vmul.f32 %v702, %v362
        %v705 = vadd.f32 %v699, %v703
        %v706 = vadd.f32 %v700, %v704
        %s707 = sld [smem:[#allocation2 + $0x44]]
        %v708 = vstv %s707
        %v709 = vmul.f32 %v708, %v423
        %v710 = vmul.f32 %v708, %v424
        %v711 = vadd.f32 %v705, %v709
        %v712 = vadd.f32 %v706, %v710
        %s713 = sld [smem:[#allocation2 + $0x14]]
        %v714 = vstv %s713
        %v715 = vmul.f32 %v714, %v383
        %v716 = vmul.f32 %v714, %v384
        %v717 = vadd.f32 %v711, %v715
        %v718 = vadd.f32 %v712, %v716
        %s719 = sld [smem:[#allocation2 + $0x45]]
        %v720 = vstv %s719
        %v721 = vmul.f32 %v720, %v431
        %v722 = vmul.f32 %v720, %v432
        %v723 = vadd.f32 %v717, %v721
        %v724 = vadd.f32 %v718, %v722
        %725 = vrot.lane.b32.xlu0 %v723, 16
        %v726 = vpop.permute.xlu0 %725
        %727 = vrot.lane.b32.xlu0 %v724, 16
        %v728 = vpop.permute.xlu0 %727
        %vm729 = vcmp.lt.s32.totalorder %v257, 16
        %v730 = vsel %vm729, %v726, %v728
        %v731 = vsel %vm729, %v728, %v726
        %s732 = scalar_lea.vmem [#allocation6], 17
        %v733 = vld [vmem:[%s732] ss:$8 sm:$0x3]
        %v735 = vlaneseq
        %v736 = vshrl.u32 %v735, 7
        %v737 = vsub.s32 0, %v736
        %v738 = vrot.slane %v733, %v737
        %v739 = vlaneseq
        %v740 = vshrl.u32 %v739, 7
        %v741 = vsub.s32 1, %v740
        %v742 = vrot.slane %v733, %v741
        %v745 = vmul.f32 %v731, %v738
        %v746 = vmul.f32 %v730, %v742
        %v747 = vadd.f32 %v641, %v745
        %v748 = vadd.f32 %v642, %v746
        %s749 = sld [smem:[#allocation2 + $0x15]]
        %v750 = vstv %s749
        %v751 = vmul.f32 %v750, %v273
        %v752 = vmul.f32 %v750, %v274
        %s753 = sld [smem:[#allocation2 + $0x46]]
        %v754 = vstv %s753
        %v755 = vmul.f32 %v754, %v391
        %v756 = vmul.f32 %v754, %v392
        %v757 = vadd.f32 %v751, %v755
        %v758 = vadd.f32 %v752, %v756
        %s759 = sld [smem:[#allocation2 + $0x16]]
        %v760 = vstv %s759
        %v761 = vmul.f32 %v760, %v295
        %v762 = vmul.f32 %v760, %v296
        %v763 = vadd.f32 %v757, %v761
        %v764 = vadd.f32 %v758, %v762
        %s765 = sld [smem:[#allocation2 + $0x47]]
        %v766 = vstv %s765
        %v767 = vmul.f32 %v766, %v399
        %v768 = vmul.f32 %v766, %v400
        %v769 = vadd.f32 %v763, %v767
        %v770 = vadd.f32 %v764, %v768
        %s771 = sld [smem:[#allocation2 + $0x17]]
        %v772 = vstv %s771
        %v773 = vmul.f32 %v772, %v317
        %v774 = vmul.f32 %v772, %v318
        %v775 = vadd.f32 %v769, %v773
        %v776 = vadd.f32 %v770, %v774
        %s777 = sld [smem:[#allocation2 + $0x48]]
        %v778 = vstv %s777
        %v779 = vmul.f32 %v778, %v407
        %v780 = vmul.f32 %v778, %v408
        %v781 = vadd.f32 %v775, %v779
        %v782 = vadd.f32 %v776, %v780
        %s783 = sld [smem:[#allocation2 + $0x18]]
        %v784 = vstv %s783
        %v785 = vmul.f32 %v784, %v250
        %v786 = vmul.f32 %v784, %v251
        %v787 = vadd.f32 %v781, %v785
        %v788 = vadd.f32 %v782, %v786
        %s789 = sld [smem:[#allocation2 + $0x49]]
        %v790 = vstv %s789
        %v791 = vmul.f32 %v790, %v242
        %v792 = vmul.f32 %v790, %v249
        %v793 = vadd.f32 %v787, %v791
        %v794 = vadd.f32 %v788, %v792
        %s795 = sld [smem:[#allocation2 + $0x19]]
        %v796 = vstv %s795
        %v797 = vmul.f32 %v796, %v339
        %v798 = vmul.f32 %v796, %v340
        %v799 = vadd.f32 %v793, %v797
        %v800 = vadd.f32 %v794, %v798
        %s801 = sld [smem:[#allocation2 + $0x4a]]
        %v802 = vstv %s801
        %v803 = vmul.f32 %v802, %v415
        %v804 = vmul.f32 %v802, %v416
        %v805 = vadd.f32 %v799, %v803
        %v806 = vadd.f32 %v800, %v804
        %s807 = sld [smem:[#allocation2 + $0x1a]]
        %v808 = vstv %s807
        %v809 = vmul.f32 %v808, %v361
        %v810 = vmul.f32 %v808, %v362
        %v811 = vadd.f32 %v805, %v809
        %v812 = vadd.f32 %v806, %v810
        %s813 = sld [smem:[#allocation2 + $0x4b]]
        %v814 = vstv %s813
        %v815 = vmul.f32 %v814, %v423
        %v816 = vmul.f32 %v814, %v424
        %v817 = vadd.f32 %v811, %v815
        %v818 = vadd.f32 %v812, %v816
        %s819 = sld [smem:[#allocation2 + $0x1b]]
        %v820 = vstv %s819
        %v821 = vmul.f32 %v820, %v383
        %v822 = vmul.f32 %v820, %v384
        %v823 = vadd.f32 %v817, %v821
        %v824 = vadd.f32 %v818, %v822
        %s825 = sld [smem:[#allocation2 + $0x4c]]
        %v826 = vstv %s825
        %v827 = vmul.f32 %v826, %v431
        %v828 = vmul.f32 %v826, %v432
        %v829 = vadd.f32 %v823, %v827
        %v830 = vadd.f32 %v824, %v828
        %v831 = vadd.f32 %v747, %v829
        %v832 = vadd.f32 %v748, %v830
        %s833 = sld [smem:[#allocation2 + $0x1c]]
        %v834 = vstv %s833
        %v835 = vmul.f32 %v834, %v273
        %v836 = vmul.f32 %v834, %v274
        %s837 = sld [smem:[#allocation2 + $0x4d]]
        %v838 = vstv %s837
        %v839 = vmul.f32 %v838, %v391
        %v840 = vmul.f32 %v838, %v392
        %v841 = vadd.f32 %v835, %v839
        %v842 = vadd.f32 %v836, %v840
        %s843 = sld [smem:[#allocation2 + $0x1d]]
        %v844 = vstv %s843
        %v845 = vmul.f32 %v844, %v295
        %v846 = vmul.f32 %v844, %v296
        %v847 = vadd.f32 %v841, %v845
        %v848 = vadd.f32 %v842, %v846
        %s849 = sld [smem:[#allocation2 + $0x4e]]
        %v850 = vstv %s849
        %v851 = vmul.f32 %v850, %v399
        %v852 = vmul.f32 %v850, %v400
        %v853 = vadd.f32 %v847, %v851
        %v854 = vadd.f32 %v848, %v852
        %s855 = sld [smem:[#allocation2 + $0x1e]]
        %v856 = vstv %s855
        %v857 = vmul.f32 %v856, %v317
        %v858 = vmul.f32 %v856, %v318
        %v859 = vadd.f32 %v853, %v857
        %v860 = vadd.f32 %v854, %v858
        %s861 = sld [smem:[#allocation2 + $0x4f]]
        %v862 = vstv %s861
        %v863 = vmul.f32 %v862, %v407
        %v864 = vmul.f32 %v862, %v408
        %v865 = vadd.f32 %v859, %v863
        %v866 = vadd.f32 %v860, %v864
        %s867 = sld [smem:[#allocation2 + $0x1f]]
        %v868 = vstv %s867
        %v869 = vmul.f32 %v868, %v250
        %v870 = vmul.f32 %v868, %v251
        %v871 = vadd.f32 %v865, %v869
        %v872 = vadd.f32 %v866, %v870
        %s873 = sld [smem:[#allocation2 + $0x50]]
        %v874 = vstv %s873
        %v875 = vmul.f32 %v874, %v242
        %v876 = vmul.f32 %v874, %v249
        %v877 = vadd.f32 %v871, %v875
        %v878 = vadd.f32 %v872, %v876
        %s879 = sld [smem:[#allocation2 + $0x20]]
        %v880 = vstv %s879
        %v881 = vmul.f32 %v880, %v339
        %v882 = vmul.f32 %v880, %v340
        %v883 = vadd.f32 %v877, %v881
        %v884 = vadd.f32 %v878, %v882
        %s885 = sld [smem:[#allocation2 + $0x51]]
        %v886 = vstv %s885
        %v887 = vmul.f32 %v886, %v415
        %v888 = vmul.f32 %v886, %v416
        %v889 = vadd.f32 %v883, %v887
        %v890 = vadd.f32 %v884, %v888
        %s891 = sld [smem:[#allocation2 + $0x21]]
        %v892 = vstv %s891
        %v893 = vmul.f32 %v892, %v361
        %v894 = vmul.f32 %v892, %v362
        %v895 = vadd.f32 %v889, %v893
        %v896 = vadd.f32 %v890, %v894
        %s897 = sld [smem:[#allocation2 + $0x52]]
        %v898 = vstv %s897
        %v899 = vmul.f32 %v898, %v423
        %v900 = vmul.f32 %v898, %v424
        %v901 = vadd.f32 %v895, %v899
        %v902 = vadd.f32 %v896, %v900
        %s903 = sld [smem:[#allocation2 + $0x22]]
        %v904 = vstv %s903
        %v905 = vmul.f32 %v904, %v383
        %v906 = vmul.f32 %v904, %v384
        %v907 = vadd.f32 %v901, %v905
        %v908 = vadd.f32 %v902, %v906
        %s909 = sld [smem:[#allocation2 + $0x53]]
        %v910 = vstv %s909
        %v911 = vmul.f32 %v910, %v431
        %v912 = vmul.f32 %v910, %v432
        %v913 = vadd.f32 %v907, %v911
        %v914 = vadd.f32 %v908, %v912
        %915 = vrot.lane.b32.xlu0 %v913, 112
        %v916 = vpop.permute.xlu0 %915
        %917 = vrot.lane.b32.xlu0 %v914, 112
        %v918 = vpop.permute.xlu0 %917
        %vm919 = vcmp.lt.s32.totalorder %v257, 112
        %v920 = vsel %vm919, %v916, %v918
        %v921 = vsel %vm919, %v918, %v916
        %s922 = scalar_lea.vmem [#allocation6], 19
        %v923 = vld [vmem:[%s922] ss:$8 sm:$0x3]
        %v925 = vlaneseq
        %v926 = vshrl.u32 %v925, 7
        %v927 = vsub.s32 0, %v926
        %v928 = vrot.slane %v923, %v927
        %v929 = vlaneseq
        %v930 = vshrl.u32 %v929, 7
        %v931 = vsub.s32 1, %v930
        %v932 = vrot.slane %v923, %v931
        %v935 = vmul.f32 %v920, %v928
        %v936 = vmul.f32 %v921, %v932
        %v937 = vadd.f32 %v831, %v935
        %v938 = vadd.f32 %v832, %v936
        %s939 = sld [smem:[#allocation2 + $0x23]]
        %v940 = vstv %s939
        %v941 = vmul.f32 %v940, %v273
        %v942 = vmul.f32 %v940, %v274
        %s943 = sld [smem:[#allocation2 + $0x54]]
        %v944 = vstv %s943
        %v945 = vmul.f32 %v944, %v391
        %v946 = vmul.f32 %v944, %v392
        %v947 = vadd.f32 %v941, %v945
        %v948 = vadd.f32 %v942, %v946
        %s949 = sld [smem:[#allocation2 + $0x24]]
        %v950 = vstv %s949
        %v951 = vmul.f32 %v950, %v295
        %v952 = vmul.f32 %v950, %v296
        %v953 = vadd.f32 %v947, %v951
        %v954 = vadd.f32 %v948, %v952
        %s955 = sld [smem:[#allocation2 + $0x55]]
        %v956 = vstv %s955
        %v957 = vmul.f32 %v956, %v399
        %v958 = vmul.f32 %v956, %v400
        %v959 = vadd.f32 %v953, %v957
        %v960 = vadd.f32 %v954, %v958
        %s961 = sld [smem:[#allocation2 + $0x25]]
        %v962 = vstv %s961
        %v963 = vmul.f32 %v962, %v317
        %v964 = vmul.f32 %v962, %v318
        %v965 = vadd.f32 %v959, %v963
        %v966 = vadd.f32 %v960, %v964
        %s967 = sld [smem:[#allocation2 + $0x56]]
        %v968 = vstv %s967
        %v969 = vmul.f32 %v968, %v407
        %v970 = vmul.f32 %v968, %v408
        %v971 = vadd.f32 %v965, %v969
        %v972 = vadd.f32 %v966, %v970
        %s973 = sld [smem:[#allocation2 + $0x26]]
        %v974 = vstv %s973
        %v975 = vmul.f32 %v974, %v250
        %v976 = vmul.f32 %v974, %v251
        %v977 = vadd.f32 %v971, %v975
        %v978 = vadd.f32 %v972, %v976
        %s979 = sld [smem:[#allocation2 + $0x57]]
        %v980 = vstv %s979
        %v981 = vmul.f32 %v980, %v242
        %v982 = vmul.f32 %v980, %v249
        %v983 = vadd.f32 %v977, %v981
        %v984 = vadd.f32 %v978, %v982
        %s985 = sld [smem:[#allocation2 + $0x27]]
        %v986 = vstv %s985
        %v987 = vmul.f32 %v986, %v339
        %v988 = vmul.f32 %v986, %v340
        %v989 = vadd.f32 %v983, %v987
        %v990 = vadd.f32 %v984, %v988
        %s991 = sld [smem:[#allocation2 + $0x58]]
        %v992 = vstv %s991
        %v993 = vmul.f32 %v992, %v415
        %v994 = vmul.f32 %v992, %v416
        %v995 = vadd.f32 %v989, %v993
        %v996 = vadd.f32 %v990, %v994
        %s997 = sld [smem:[#allocation2 + $0x28]]
        %v998 = vstv %s997
        %v999 = vmul.f32 %v998, %v361
        %v1000 = vmul.f32 %v998, %v362
        %v1001 = vadd.f32 %v995, %v999
        %v1002 = vadd.f32 %v996, %v1000
        %s1003 = sld [smem:[#allocation2 + $0x59]]
        %v1004 = vstv %s1003
        %v1005 = vmul.f32 %v1004, %v423
        %v1006 = vmul.f32 %v1004, %v424
        %v1007 = vadd.f32 %v1001, %v1005
        %v1008 = vadd.f32 %v1002, %v1006
        %s1009 = sld [smem:[#allocation2 + $0x29]]
        %v1010 = vstv %s1009
        %v1011 = vmul.f32 %v1010, %v383
        %v1012 = vmul.f32 %v1010, %v384
        %v1013 = vadd.f32 %v1007, %v1011
        %v1014 = vadd.f32 %v1008, %v1012
        %s1015 = sld [smem:[#allocation2 + $0x5a]]
        %v1016 = vstv %s1015
        %v1017 = vmul.f32 %v1016, %v431
        %v1018 = vmul.f32 %v1016, %v432
        %v1019 = vadd.f32 %v1013, %v1017
        %v1020 = vadd.f32 %v1014, %v1018
        %1021 = vrot.lane.b32.xlu0 %v1019, 96
        %v1022 = vpop.permute.xlu0 %1021
        %1023 = vrot.lane.b32.xlu0 %v1020, 96
        %v1024 = vpop.permute.xlu0 %1023
        %vm1025 = vcmp.lt.s32.totalorder %v257, 96
        %v1026 = vsel %vm1025, %v1022, %v1024
        %v1027 = vsel %vm1025, %v1024, %v1022
        %s1028 = scalar_lea.vmem [#allocation6], 20
        %v1029 = vld [vmem:[%s1028] ss:$8 sm:$0x3]
        %v1031 = vlaneseq
        %v1032 = vshrl.u32 %v1031, 7
        %v1033 = vsub.s32 0, %v1032
        %v1034 = vrot.slane %v1029, %v1033
        %v1035 = vlaneseq
        %v1036 = vshrl.u32 %v1035, 7
        %v1037 = vsub.s32 1, %v1036
        %v1038 = vrot.slane %v1029, %v1037
        %v1041 = vmul.f32 %v1026, %v1034
        %v1042 = vmul.f32 %v1027, %v1038
        %v1043 = vadd.f32 %v937, %v1041
        %v1044 = vadd.f32 %v938, %v1042
        %s1045 = sld [smem:[#allocation2 + $0x2a]]
        %v1046 = vstv %s1045
        %v1047 = vmul.f32 %v1046, %v273
        %v1048 = vmul.f32 %v1046, %v274
        %s1049 = sld [smem:[#allocation2 + $0x5b]]
        %v1050 = vstv %s1049
        %v1051 = vmul.f32 %v1050, %v391
        %v1052 = vmul.f32 %v1050, %v392
        %v1053 = vadd.f32 %v1047, %v1051
        %v1054 = vadd.f32 %v1048, %v1052
        %s1055 = sld [smem:[#allocation2 + $0x2b]]
        %v1056 = vstv %s1055
        %v1057 = vmul.f32 %v1056, %v295
        %v1058 = vmul.f32 %v1056, %v296
        %v1059 = vadd.f32 %v1053, %v1057
        %v1060 = vadd.f32 %v1054, %v1058
        %s1061 = sld [smem:[#allocation2 + $0x5c]]
        %v1062 = vstv %s1061
        %v1063 = vmul.f32 %v1062, %v399
        %v1064 = vmul.f32 %v1062, %v400
        %v1065 = vadd.f32 %v1059, %v1063
        %v1066 = vadd.f32 %v1060, %v1064
        %s1067 = sld [smem:[#allocation2 + $0x2c]]
        %v1068 = vstv %s1067
        %v1069 = vmul.f32 %v1068, %v317
        %v1070 = vmul.f32 %v1068, %v318
        %v1071 = vadd.f32 %v1065, %v1069
        %v1072 = vadd.f32 %v1066, %v1070
        %s1073 = sld [smem:[#allocation2 + $0x5d]]
        %v1074 = vstv %s1073
        %v1075 = vmul.f32 %v1074, %v407
        %v1076 = vmul.f32 %v1074, %v408
        %v1077 = vadd.f32 %v1071, %v1075
        %v1078 = vadd.f32 %v1072, %v1076
        %s1079 = sld [smem:[#allocation2 + $0x2d]]
        %v1080 = vstv %s1079
        %v1081 = vmul.f32 %v1080, %v250
        %v1082 = vmul.f32 %v1080, %v251
        %v1083 = vadd.f32 %v1077, %v1081
        %v1084 = vadd.f32 %v1078, %v1082
        %s1085 = sld [smem:[#allocation2 + $0x5e]]
        %v1086 = vstv %s1085
        %v1087 = vmul.f32 %v1086, %v242
        %v1088 = vmul.f32 %v1086, %v249
        %v1089 = vadd.f32 %v1083, %v1087
        %v1090 = vadd.f32 %v1084, %v1088
        %s1091 = sld [smem:[#allocation2 + $0x2e]]
        %v1092 = vstv %s1091
        %v1093 = vmul.f32 %v1092, %v339
        %v1094 = vmul.f32 %v1092, %v340
        %v1095 = vadd.f32 %v1089, %v1093
        %v1096 = vadd.f32 %v1090, %v1094
        %s1097 = sld [smem:[#allocation2 + $0x5f]]
        %v1098 = vstv %s1097
        %v1099 = vmul.f32 %v1098, %v415
        %v1100 = vmul.f32 %v1098, %v416
        %v1101 = vadd.f32 %v1095, %v1099
        %v1102 = vadd.f32 %v1096, %v1100
        %s1103 = sld [smem:[#allocation2 + $0x2f]]
        %v1104 = vstv %s1103
        %v1105 = vmul.f32 %v1104, %v361
        %v1106 = vmul.f32 %v1104, %v362
        %v1107 = vadd.f32 %v1101, %v1105
        %v1108 = vadd.f32 %v1102, %v1106
        %s1109 = sld [smem:[#allocation2 + $0x60]]
        %v1110 = vstv %s1109
        %v1111 = vmul.f32 %v1110, %v423
        %v1112 = vmul.f32 %v1110, %v424
        %v1113 = vadd.f32 %v1107, %v1111
        %v1114 = vadd.f32 %v1108, %v1112
        %s1115 = sld [smem:[#allocation2 + $0x30]]
        %v1116 = vstv %s1115
        %v1117 = vmul.f32 %v1116, %v383
        %v1118 = vmul.f32 %v1116, %v384
        %v1119 = vadd.f32 %v1113, %v1117
        %v1120 = vadd.f32 %v1114, %v1118
        %s1121 = sld [smem:[#allocation2 + $0x61]]
        %v1122 = vstv %s1121
        %v1123 = vmul.f32 %v1122, %v431
        %v1124 = vmul.f32 %v1122, %v432
        %v1125 = vadd.f32 %v1119, %v1123
        %v1126 = vadd.f32 %v1120, %v1124
        %1127 = vrot.lane.b32.xlu0 %v1125, 80
        %v1128 = vpop.permute.xlu0 %1127
        %1129 = vrot.lane.b32.xlu0 %v1126, 80
        %v1130 = vpop.permute.xlu0 %1129
        %vm1131 = vcmp.lt.s32.totalorder %v257, 80
        %v1132 = vsel %vm1131, %v1128, %v1130
        %v1133 = vsel %vm1131, %v1130, %v1128
        %s1134 = scalar_lea.vmem [#allocation6], 21
        %v1135 = vld [vmem:[%s1134] ss:$8 sm:$0x3]
        %v1137 = vlaneseq
        %v1138 = vshrl.u32 %v1137, 7
        %v1139 = vsub.s32 0, %v1138
        %v1140 = vrot.slane %v1135, %v1139
        %v1141 = vlaneseq
        %v1142 = vshrl.u32 %v1141, 7
        %v1143 = vsub.s32 1, %v1142
        %v1144 = vrot.slane %v1135, %v1143
        %v1147 = vmul.f32 %v1132, %v1140
        %v1148 = vmul.f32 %v1133, %v1144
        %v1149 = vadd.f32 %v1043, %v1147
        %v1150 = vadd.f32 %v1044, %v1148
        %v1151 = vsub.f32 0.0, %v1149
        %v1152 = vsub.f32 0.0, %v1150
        %v1153 = vmul.f32 %v1151, 1.442695
        %v1154 = vpow.pop %v1153
        %v1155 = vmul.f32 %v1152, 1.442695
        %v1156 = vpow.pop %v1155
        %v1157 = vadd.f32 %v1154, 1.0
        %v1158 = vadd.f32 %v1156, 1.0
        %v1159 = vrcp.pop %v1157
        %v1160 = vmul.f32 1.0, %v1159
        %v1161 = vrcp.pop %v1158
        %v1162 = vmul.f32 1.0, %v1161
        %v1163 = vlaneseq
        %v1164 = vshrl.u32 %v1163, 7
        %v1165 = vsub.s32 0, %v1164
        %v1166 = vrot.slane %v1160, %v1165
        %v1167 = vlaneseq
        %v1168 = vshrl.u32 %v1167, 7
        %v1169 = vsub.s32 0, %v1168
        %v1170 = vrot.slane %v1162, %v1169
        %v1173 = vcombine.low %v1166, %v1170
        %v1175 = vmul.f32 %v217, %v1173
        %s1176 = smul.addr %s214, 4
        %s1177 = scalar_lea.vmem %s213, %s1176 [#allocation9]
        %1178 = vst [vmem:[%s1177] sm:$0xff] %v1175
        %s1179 = sand.u32 %s98, 1
        %s1180 = scalar_lea.sflag [#allocation4], %s1179
        %s1181 = sand.u32 %s98, 1
        %s1182 = smul.addr %s1181, 8
        %s1183 = scalar_lea.vmem [#allocation9], %s1182
        // Predicated region
        $region45: #{tpu_custom_call.1} parent=31 // pred_check
          %p1184 = pneg %p108
        $region46: #{tpu_custom_call.1} parent=31 // pred_check_branch
          %1186 = sbr.rel (%p1184) target = $region48
        $region47: #{tpu_custom_call.1} parent=31 // pred_region
          %s1188 = ssub.s32 128, 128
          %1189 = vsyncadd %s1180, %s1188
          %s1190 = smul.addr %s22, 2
          %s1191 = smul.addr %s1190, 64
          %s1192 = scalar_lea.hbm %s3, %s1191
          %s1194 = sshll.u32 %s1183, 4
          %s1195 = int_to_ptr.vmem [resolvable:$true] %s1194
          %1197 = dma.vmem_to_hbm [thread:$0]  %s1195, 128, %s1192, %s1180
        $region48: #{tpu_custom_call.1} parent=31 // pred_fallthru
          _
      $region32: #{tpu_custom_call.1} parent=5 // pred_fallthru
        _
      %p1198 = scmp.le.s32.totalorder 2, %s17
      // Predicated region
      $region49: #{tpu_custom_call.1} parent=5 // pred_check
        %p1199 = pneg %p1198
      $region50: #{tpu_custom_call.1} parent=5 // pred_check_branch
        %1201 = sbr.rel (%p1199) target = $region52
      $region51: #{tpu_custom_call.1} parent=5 // pred_region
        %s1202 = ssub.s32 %s17, 2
        // Predicated region
        $region53: #{tpu_custom_call.1} parent=51 // pred_check
          %p1203 = pneg %p114
        $region54: #{tpu_custom_call.1} parent=51 // pred_check_branch
          %1205 = sbr.rel (%p1203) target = $region56
        $region55: #{tpu_custom_call.1} parent=51 // pred_region
          %s1206 = sand.u32 %s99, 1
          %s1207 = scalar_lea.sflag [#allocation4], %s1206
          %s1208 = sand.u32 %s99, 1
          %s1209 = smul.addr %s1208, 8
          %s1210 = scalar_lea.vmem [#allocation9], %s1209
          %1211 = dma.done %s1207, 128
        $region56: #{tpu_custom_call.1} parent=51 // pred_fallthru
          _
      $region52: #{tpu_custom_call.1} parent=5 // pred_fallthru
        _
    $region6: #{tpu_custom_call.1} parent=1 // loop_footer
      %s21 = sadd.s32 1, %s17
    $region7: #{tpu_custom_call.1} parent=1 // loop_footer_branch
      %16 = sbr.rel target = $region3
    $region8: #{tpu_custom_call.1} parent=1 // loop_exit
      _
    %1212 = vsyncpa [#allocation3], 1
    %s1213 = scalar_lea.sflag [#allocation3], 1
    %1214 = vsyncpa %s1213, 1
    %1215 = vsyncpa [#allocation8], 1
    %s1216 = scalar_lea.sflag [#allocation8], 1
    %1217 = vsyncpa %s1216, 1
    %1218 = vsyncpa [#allocation4], 1
    %s1219 = scalar_lea.sflag [#allocation4], 1
    %1220 = vsyncpa %s1219, 1
    %1221 = vsyncpa [#allocation5], 1
    %s1222 = scalar_lea.sflag [#allocation5], 1
    %1223 = vsyncpa %s1222, 1

</llo_original>
